<compile_context>
chip_gen: v6e
topology: v6e:2x2x1
jax: 0.10.0
libtpu: 0.0.40
codegen_flags: <defaults>
</compile_context>

<pallas_src>
import jax
import jax.numpy as jnp
from jax import lax
from jax.experimental import pallas as pl
from jax.experimental.pallas import tpu as pltpu

EPS = 1e-5          # PyTorch BatchNorm2d default eps
LANE = 128          # channel axis padded to the TPU lane width


def _round_up(x, m):
    return (x + m - 1) // m * m


def _vmem_limit_bytes():
    """Per-generation VMEM budget (~3/4 of the chip's VMEM per TensorCore)."""
    try:
        info = pltpu.get_tpu_info()
        for attr in ("vmem_capacity_bytes", "vmem_size_bytes"):
            cap = getattr(info, attr, None)
            if cap:
                return int(cap) * 3 // 4
    except Exception:
        pass
    return 32 * 1024 * 1024   # conservative fallback that fits every chip


def _pick_tile_h(H, W, Cin, CP, in_itemsize, vmem_limit):
    """Largest divisor of H whose per-step working set fits the VMEM budget."""
    budget = int(vmem_limit * 0.6)          # headroom for Mosaic scratch
    x_resident = 2 * (H + 2) * (W + 2) * Cin * in_itemsize   # double-buffered
    w_bytes = 2 * 9 * Cin * CP * in_itemsize                 # double-buffered
    best = 1
    for th in range(1, H + 1):
        if H % th:
            continue
        out_tile = 2 * th * W * CP * 4      # f32 output block, double-buffered
        acc = th * W * CP * 4               # f32 accumulator
        tap_tmp = 2 * th * W * Cin * in_itemsize   # per-tap patch temporaries
        if x_resident + w_bytes + out_tile + acc + tap_tmp <= budget:
            best = th
    return best


# ---------------------------------------------------------------------------
# Shared conv helper: 3x3 conv of a (TH+2, W+2, Cin) halo tile -> f32 (TH*W, CP)
# via 9 unrolled K=Cin MXU matmuls accumulated in f32.
# ---------------------------------------------------------------------------
def _conv_tile(x, w_ref, TH, W, Cin, CP):
    acc = jnp.zeros((TH * W, CP), jnp.float32)
    for dy in range(3):
        for dx in range(3):
            patch = x[dy:dy + TH, dx:dx + W, :].reshape(TH * W, Cin)
            acc = acc + jnp.dot(patch, w_ref[dy, dx],
                                preferred_element_type=jnp.float32)
    return acc


# ---------------------------------------------------------------------------
# Pass 1: conv + per-channel sum / sum-of-squares partials (no conv output).
# ---------------------------------------------------------------------------
def _make_stats_kernel(TH, W, Cin, CP, SROWS):
    def kernel(x_ref, w_ref, sum_ref, sq_ref):
        # x_ref : (H+2, W+2, Cin) padded input, resident for this batch element
        # w_ref : (3, 3, Cin, CP)
        # sum_ref / sq_ref : (SROWS, CP) per-channel partials (accumulated over h)
        ih = pl.program_id(1)
        h0 = pl.multiple_of(ih * TH, TH)
        x = x_ref[pl.ds(h0, TH + 2), :, :]             # (TH+2, W+2, Cin)
        acc = _conv_tile(x, w_ref, TH, W, Cin, CP)     # (TH*W, CP) f32

        @pl.when(ih == 0)
        def _init():
            sum_ref[...] = jnp.zeros_like(sum_ref)
            sq_ref[...] = jnp.zeros_like(sq_ref)

        if SROWS == 8:
            # Sublane-aligned partial sums: no cross-sublane reduce, no 8-row
            # broadcast; the final 8-row reduce happens in the wrapper.
            a3 = acc.reshape(-1, 8, CP)
            sum_ref[...] += jnp.sum(a3, axis=0)
            sq_ref[...] += jnp.sum(a3 * a3, axis=0)
        else:
            sum_ref[...] += jnp.sum(acc, axis=0, keepdims=True)
            sq_ref[...] += jnp.sum(acc * acc, axis=0, keepdims=True)
    return kernel


def _conv_stats(x_pad, w_hwio, *, N, H, W, Cin, CP, TH, SROWS, vmem_limit):
    nh = H // TH
    # Whole padded H resident per batch element (index map ignores h): one DMA
    # per n, prefetched while the previous n's tiles compute.
    x_spec = pl.BlockSpec((None, H + 2, W + 2, Cin), lambda n, h: (n, 0, 0, 0))
    w_spec = pl.BlockSpec((3, 3, Cin, CP), lambda n, h: (0, 0, 0, 0))
    stat_spec = pl.BlockSpec((None, SROWS, CP), lambda n, h: (n, 0, 0))
    stat_shape = jax.ShapeDtypeStruct((N, SROWS, CP), jnp.float32)
    return pl.pallas_call(
        _make_stats_kernel(TH, W, Cin, CP, SROWS),
        grid=(N, nh),
        in_specs=[x_spec, w_spec],
        out_specs=(stat_spec, stat_spec),
        out_shape=(stat_shape, stat_shape),
        compiler_params=pltpu.CompilerParams(
            dimension_semantics=("parallel", "arbitrary"),
            vmem_limit_bytes=vmem_limit),
    )(x_pad, w_hwio)


# ---------------------------------------------------------------------------
# Pass 2: recompute conv tile + scale/shift + ReLU, fused into the final store.
# ---------------------------------------------------------------------------
def _make_conv_bn_relu_kernel(TH, W, Cin, CP):
    def kernel(x_ref, w_ref, scale_ref, shift_ref, o_ref):
        ih = pl.program_id(1)
        h0 = pl.multiple_of(ih * TH, TH)
        x = x_ref[pl.ds(h0, TH + 2), :, :]
        acc = _conv_tile(x, w_ref, TH, W, Cin, CP)       # (TH*W, CP) f32
        y = acc * scale_ref[...] + shift_ref[...]        # (1, CP) broadcast
        o_ref[...] = jnp.maximum(y, 0.0).reshape(TH, W, CP).astype(o_ref.dtype)
    return kernel


def _conv_bn_relu(x_pad, w_hwio, scale, shift, *, N, H, W, Cin, CP, TH,
                  vmem_limit):
    nh = H // TH
    x_spec = pl.BlockSpec((None, H + 2, W + 2, Cin), lambda n, h: (n, 0, 0, 0))
    w_spec = pl.BlockSpec((3, 3, Cin, CP), lambda n, h: (0, 0, 0, 0))
    vec_spec = pl.BlockSpec((1, CP), lambda n, h: (0, 0))
    return pl.pallas_call(
        _make_conv_bn_relu_kernel(TH, W, Cin, CP),
        grid=(N, nh),
        in_specs=[x_spec, w_spec, vec_spec, vec_spec],
        out_specs=pl.BlockSpec((None, TH, W, CP), lambda n, h: (n, h, 0, 0)),
        out_shape=jax.ShapeDtypeStruct((N, H, W, CP), jnp.float32),
        compiler_params=pltpu.CompilerParams(
            dimension_semantics=("parallel", "parallel"),
            vmem_limit_bytes=vmem_limit),
    )(x_pad, w_hwio, scale, shift)


# ---------------------------------------------------------------------------
# Wrapper with the PyTorch module's NCHW interface.
# ---------------------------------------------------------------------------
def basic_block_forward(x_nchw, w_oihw, bias, gamma, beta,
                        *, use_bf16_matmul=True, tile_h=None,
                        nhwc_output=False):
    """Fused Conv(3x3, s=1, p=1) + BatchNorm2d(batch stats) + ReLU.

    x_nchw : (N, Cin, H, W) f32, w_oihw : (Cout, Cin, 3, 3) f32,
    bias/gamma/beta : (Cout,) f32.  Returns (N, Cout, H, W) f32
    (or NHWC if nhwc_output=True).
    """
    N, Cin, H, W = x_nchw.shape
    Cout = w_oihw.shape[0]
    CP = _round_up(Cout, LANE)             # lane-dense channel padding
    # TODO(synk): for Cout=64 stages CP=128 doubles output HBM traffic; fold a
    # factor of W into the lane dim (or keep a 64-lane output) if that matters.

    vmem_limit = _vmem_limit_bytes()
    compute_dtype = jnp.bfloat16 if use_bf16_matmul else jnp.float32
    itemsize = jnp.dtype(compute_dtype).itemsize

    if tile_h is None:
        TH = _pick_tile_h(H, W, Cin, CP, itemsize, vmem_limit)
    else:
        assert H % tile_h == 0, f"tile_h={tile_h} must divide H={H}"
        TH = int(tile_h)
    SROWS = 8 if (TH * W) % 8 == 0 else 1

    # ---- layout prep (plain XLA glue; NCHW API preserved) ----
    x_nhwc = jnp.transpose(x_nchw, (0, 2, 3, 1)).astype(jnp.float32)
    x_pad = jnp.pad(x_nhwc, ((0, 0), (1, 1), (1, 1), (0, 0))).astype(compute_dtype)
    w_hwio = jnp.transpose(w_oihw, (2, 3, 1, 0)).astype(jnp.float32)   # (3,3,Cin,Cout)
    w_hwio = jnp.pad(w_hwio, ((0, 0), (0, 0), (0, 0), (0, CP - Cout)))
    w_hwio = w_hwio.astype(compute_dtype)
    # Conv bias is dropped: training-mode BN subtracts the batch mean, which
    # cancels a per-channel constant exactly, so the forward output is
    # identical (same reason ResNet uses bias=False).
    # TODO(synk): bake the bias into running_mean if running-stat tracking is
    # ever added; it matters there even though it cancels here.
    del bias

    # ---- pass 1: per-channel sum / sum(x^2) of the conv output ----
    s_out, sq_out = _conv_stats(x_pad, w_hwio, N=N, H=H, W=W, Cin=Cin, CP=CP,
                                TH=TH, SROWS=SROWS, vmem_limit=vmem_limit)
    # TODO(synk): on v7x with N < 2, split h-tiles into two "parallel" groups
    # with per-group partials so both TensorCores work during pass 1.

    # ---- finalize BN statistics (tiny per-channel math; biased variance,
    #      matching PyTorch training-mode normalization) ----
    # TODO(synk): E[x^2]-E[x]^2 in f32 can cancel badly for N*H*W >~ 1e6 per
    # channel; switch to per-tile centered / compensated accumulation then.
    cnt = jnp.float32(N * H * W)
    tot = jnp.sum(s_out, axis=(0, 1))
    tot_sq = jnp.sum(sq_out, axis=(0, 1))
    mean = tot / cnt
    var = jnp.maximum(tot_sq / cnt - mean * mean, 0.0)
    inv_std = lax.rsqrt(var + EPS)
    g = jnp.pad(gamma.astype(jnp.float32), (0, CP - Cout))
    b = jnp.pad(beta.astype(jnp.float32), (0, CP - Cout))
    scale = (g * inv_std).reshape(1, CP)
    shift = (b - mean * g * inv_std).reshape(1, CP)

    # ---- pass 2: recompute conv + scale/shift + ReLU, write final output ----
    out_nhwc = _conv_bn_relu(x_pad, w_hwio, scale, shift, N=N, H=H, W=W,
                             Cin=Cin, CP=CP, TH=TH, vmem_limit=vmem_limit)
    out_nhwc = out_nhwc[..., :Cout]
    if nhwc_output:                    # NHWC consumers can skip the transpose
        return out_nhwc
    return jnp.transpose(out_nhwc, (0, 3, 1, 2))


# ---------------------------------------------------------------------------
# Pure-JAX reference of the same forward pass (for the self-check).
# ---------------------------------------------------------------------------
def _reference(x_nchw, w_oihw, bias, gamma, beta):
    conv = lax.conv_general_dilated(
        x_nchw, w_oihw, window_strides=(1, 1), padding=((1, 1), (1, 1)),
        dimension_numbers=("NCHW", "OIHW", "NCHW"))
    conv = conv + bias[None, :, None, None]
    mean = jnp.mean(conv, axis=(0, 2, 3), keepdims=True)
    var = jnp.mean((conv - mean) ** 2, axis=(0, 2, 3), keepdims=True)
    y = (conv - mean) * lax.rsqrt(var + EPS)
    y = y * gamma[None, :, None, None] + beta[None, :, None, None]
    return jnp.maximum(y, 0.0)


if __name__ == "__main__":
    N, Cin, Cout, H, W = 2, 4, 8, 16, 16

    key = jax.random.PRNGKey(0)
    kx, kw, kb, kg, kbe = jax.random.split(key, 5)
    x = jax.random.normal(kx, (N, Cin, H, W), dtype=jnp.float32)
    w = jax.random.normal(kw, (Cout, Cin, 3, 3), dtype=jnp.float32) * 0.1
    b = jax.random.normal(kb, (Cout,), dtype=jnp.float32) * 0.1
    gamma = 1.0 + 0.1 * jax.random.normal(kg, (Cout,), dtype=jnp.float32)
    beta = 0.1 * jax.random.normal(kbe, (Cout,), dtype=jnp.float32)

    ref = _reference(x, w, b, gamma, beta)

    # Default path: bf16 MXU operands, f32 accumulation + f32 BN/ReLU.
    out = jax.block_until_ready(basic_block_forward(x, w, b, gamma, beta))
    assert out.shape == (N, Cout, H, W)
    # Tight check against the reference run on identically bf16-rounded inputs.
    x_r = x.astype(jnp.bfloat16).astype(jnp.float32)
    w_r = w.astype(jnp.bfloat16).astype(jnp.float32)
    ref_bf16 = _reference(x_r, w_r, b, gamma, beta)
    assert jnp.allclose(out, ref_bf16, atol=2e-3, rtol=2e-3), "bf16 path mismatch"
    # Loose sanity against the unrounded reference (only input rounding remains).
    assert float(jnp.max(jnp.abs(out - ref))) < 0.25, "bf16 path sanity"

    # f32 MXU path: bit-tight vs the reference.
    out32 = jax.block_until_ready(
        basic_block_forward(x, w, b, gamma, beta, use_bf16_matmul=False))
    assert out32.shape == (N, Cout, H, W)
    assert jnp.allclose(out32, ref, atol=2e-4, rtol=2e-4), "f32 path mismatch"

    print("KERNEL_OK")
</pallas_src>

<mosaic_0001>
module attributes {stable_mosaic.version = 11 : i64} {
  func.func @kernel(%arg0: i32, %arg1: i32, %arg2: memref<1x18x18x4xbf16, #tpu.memory_space<vmem>>, %arg3: memref<3x3x4x128xbf16, #tpu.memory_space<vmem>>, %arg4: memref<1x8x128xf32, #tpu.memory_space<vmem>>, %arg5: memref<1x8x128xf32, #tpu.memory_space<vmem>>) attributes {dimension_semantics = [#tpu.dimension_semantics<parallel>, #tpu.dimension_semantics<arbitrary>], iteration_bounds = array<i64: 2, 1>, scalar_prefetch = 0 : i64, scratch_operands = 0 : i64, tpu.core_type = #tpu.core_type<tc>, window_params = [{transform_indices = @transform_0, window_bounds = array<i64: 1, 18, 18, 4>}, {pipeline_mode = #tpu.pipeline_mode<synchronous>, transform_indices = @transform_1, window_bounds = array<i64: 3, 3, 4, 128>}, {transform_indices = @transform_2, window_bounds = array<i64: 1, 8, 128>}, {transform_indices = @transform_3, window_bounds = array<i64: 1, 8, 128>}]} {
    %c16_i32 = arith.constant 16 : i32
    %0 = arith.muli %arg1, %c16_i32 : i32
    %1 = tpu.assume_multiple %0, 16 : i32
    %c0 = arith.constant 0 : index
    %2 = arith.index_cast %1 : i32 to index
    %c0_0 = arith.constant 0 : index
    %c0_1 = arith.constant 0 : index
    %3 = vector.load %arg2[%c0, %2, %c0_0, %c0_1] : memref<1x18x18x4xbf16, #tpu.memory_space<vmem>>, vector<1x18x18x4xbf16>
    %4 = vector.shape_cast %3 : vector<1x18x18x4xbf16> to vector<18x18x4xbf16>
    %cst = arith.constant 0.000000e+00 : f32
    %5 = vector.broadcast %cst : f32 to vector<256x128xf32>
    %6 = vector.extract_strided_slice %4 {offsets = [0, 0, 0], sizes = [16, 16, 4], strides = [1, 1, 1]} : vector<18x18x4xbf16> to vector<16x16x4xbf16>
    %7 = vector.shape_cast %6 : vector<16x16x4xbf16> to vector<256x4xbf16>
    %c0_2 = arith.constant 0 : index
    %c0_3 = arith.constant 0 : index
    %c0_4 = arith.constant 0 : index
    %c0_5 = arith.constant 0 : index
    %8 = vector.load %arg3[%c0_2, %c0_3, %c0_4, %c0_5] : memref<3x3x4x128xbf16, #tpu.memory_space<vmem>>, vector<1x1x4x128xbf16>
    %9 = vector.shape_cast %8 : vector<1x1x4x128xbf16> to vector<4x128xbf16>
    %cst_6 = arith.constant dense<0.000000e+00> : vector<256x128xf32>
    %10 = tpu.matmul %7, %9, %cst_6 {dimension_numbers = #tpu.dot_dimension_numbers<[1], [0], [0], [1], [0, 0, 1, 1], [], []>} : vector<256x4xbf16>, vector<4x128xbf16>, vector<256x128xf32> -> vector<256x128xf32>
    %11 = arith.addf %5, %10 : vector<256x128xf32>
    %12 = vector.extract_strided_slice %4 {offsets = [0, 1, 0], sizes = [16, 16, 4], strides = [1, 1, 1]} : vector<18x18x4xbf16> to vector<16x16x4xbf16>
    %13 = vector.shape_cast %12 : vector<16x16x4xbf16> to vector<256x4xbf16>
    %c0_7 = arith.constant 0 : index
    %c1 = arith.constant 1 : index
    %c0_8 = arith.constant 0 : index
    %c0_9 = arith.constant 0 : index
    %14 = vector.load %arg3[%c0_7, %c1, %c0_8, %c0_9] : memref<3x3x4x128xbf16, #tpu.memory_space<vmem>>, vector<1x1x4x128xbf16>
    %15 = vector.shape_cast %14 : vector<1x1x4x128xbf16> to vector<4x128xbf16>
    %cst_10 = arith.constant dense<0.000000e+00> : vector<256x128xf32>
    %16 = tpu.matmul %13, %15, %cst_10 {dimension_numbers = #tpu.dot_dimension_numbers<[1], [0], [0], [1], [0, 0, 1, 1], [], []>} : vector<256x4xbf16>, vector<4x128xbf16>, vector<256x128xf32> -> vector<256x128xf32>
    %17 = arith.addf %11, %16 : vector<256x128xf32>
    %18 = vector.extract_strided_slice %4 {offsets = [0, 2, 0], sizes = [16, 16, 4], strides = [1, 1, 1]} : vector<18x18x4xbf16> to vector<16x16x4xbf16>
    %19 = vector.shape_cast %18 : vector<16x16x4xbf16> to vector<256x4xbf16>
    %c0_11 = arith.constant 0 : index
    %c2 = arith.constant 2 : index
    %c0_12 = arith.constant 0 : index
    %c0_13 = arith.constant 0 : index
    %20 = vector.load %arg3[%c0_11, %c2, %c0_12, %c0_13] : memref<3x3x4x128xbf16, #tpu.memory_space<vmem>>, vector<1x1x4x128xbf16>
    %21 = vector.shape_cast %20 : vector<1x1x4x128xbf16> to vector<4x128xbf16>
    %cst_14 = arith.constant dense<0.000000e+00> : vector<256x128xf32>
    %22 = tpu.matmul %19, %21, %cst_14 {dimension_numbers = #tpu.dot_dimension_numbers<[1], [0], [0], [1], [0, 0, 1, 1], [], []>} : vector<256x4xbf16>, vector<4x128xbf16>, vector<256x128xf32> -> vector<256x128xf32>
    %23 = arith.addf %17, %22 : vector<256x128xf32>
    %24 = vector.extract_strided_slice %4 {offsets = [1, 0, 0], sizes = [16, 16, 4], strides = [1, 1, 1]} : vector<18x18x4xbf16> to vector<16x16x4xbf16>
    %25 = vector.shape_cast %24 : vector<16x16x4xbf16> to vector<256x4xbf16>
    %c1_15 = arith.constant 1 : index
    %c0_16 = arith.constant 0 : index
    %c0_17 = arith.constant 0 : index
    %c0_18 = arith.constant 0 : index
    %26 = vector.load %arg3[%c1_15, %c0_16, %c0_17, %c0_18] : memref<3x3x4x128xbf16, #tpu.memory_space<vmem>>, vector<1x1x4x128xbf16>
    %27 = vector.shape_cast %26 : vector<1x1x4x128xbf16> to vector<4x128xbf16>
    %cst_19 = arith.constant dense<0.000000e+00> : vector<256x128xf32>
    %28 = tpu.matmul %25, %27, %cst_19 {dimension_numbers = #tpu.dot_dimension_numbers<[1], [0], [0], [1], [0, 0, 1, 1], [], []>} : vector<256x4xbf16>, vector<4x128xbf16>, vector<256x128xf32> -> vector<256x128xf32>
    %29 = arith.addf %23, %28 : vector<256x128xf32>
    %30 = vector.extract_strided_slice %4 {offsets = [1, 1, 0], sizes = [16, 16, 4], strides = [1, 1, 1]} : vector<18x18x4xbf16> to vector<16x16x4xbf16>
    %31 = vector.shape_cast %30 : vector<16x16x4xbf16> to vector<256x4xbf16>
    %c1_20 = arith.constant 1 : index
    %c1_21 = arith.constant 1 : index
    %c0_22 = arith.constant 0 : index
    %c0_23 = arith.constant 0 : index
    %32 = vector.load %arg3[%c1_20, %c1_21, %c0_22, %c0_23] : memref<3x3x4x128xbf16, #tpu.memory_space<vmem>>, vector<1x1x4x128xbf16>
    %33 = vector.shape_cast %32 : vector<1x1x4x128xbf16> to vector<4x128xbf16>
    %cst_24 = arith.constant dense<0.000000e+00> : vector<256x128xf32>
    %34 = tpu.matmul %31, %33, %cst_24 {dimension_numbers = #tpu.dot_dimension_numbers<[1], [0], [0], [1], [0, 0, 1, 1], [], []>} : vector<256x4xbf16>, vector<4x128xbf16>, vector<256x128xf32> -> vector<256x128xf32>
    %35 = arith.addf %29, %34 : vector<256x128xf32>
    %36 = vector.extract_strided_slice %4 {offsets = [1, 2, 0], sizes = [16, 16, 4], strides = [1, 1, 1]} : vector<18x18x4xbf16> to vector<16x16x4xbf16>
    %37 = vector.shape_cast %36 : vector<16x16x4xbf16> to vector<256x4xbf16>
    %c1_25 = arith.constant 1 : index
    %c2_26 = arith.constant 2 : index
    %c0_27 = arith.constant 0 : index
    %c0_28 = arith.constant 0 : index
    %38 = vector.load %arg3[%c1_25, %c2_26, %c0_27, %c0_28] : memref<3x3x4x128xbf16, #tpu.memory_space<vmem>>, vector<1x1x4x128xbf16>
    %39 = vector.shape_cast %38 : vector<1x1x4x128xbf16> to vector<4x128xbf16>
    %cst_29 = arith.constant dense<0.000000e+00> : vector<256x128xf32>
    %40 = tpu.matmul %37, %39, %cst_29 {dimension_numbers = #tpu.dot_dimension_numbers<[1], [0], [0], [1], [0, 0, 1, 1], [], []>} : vector<256x4xbf16>, vector<4x128xbf16>, vector<256x128xf32> -> vector<256x128xf32>
    %41 = arith.addf %35, %40 : vector<256x128xf32>
    %42 = vector.extract_strided_slice %4 {offsets = [2, 0, 0], sizes = [16, 16, 4], strides = [1, 1, 1]} : vector<18x18x4xbf16> to vector<16x16x4xbf16>
    %43 = vector.shape_cast %42 : vector<16x16x4xbf16> to vector<256x4xbf16>
    %c2_30 = arith.constant 2 : index
    %c0_31 = arith.constant 0 : index
    %c0_32 = arith.constant 0 : index
    %c0_33 = arith.constant 0 : index
    %44 = vector.load %arg3[%c2_30, %c0_31, %c0_32, %c0_33] : memref<3x3x4x128xbf16, #tpu.memory_space<vmem>>, vector<1x1x4x128xbf16>
    %45 = vector.shape_cast %44 : vector<1x1x4x128xbf16> to vector<4x128xbf16>
    %cst_34 = arith.constant dense<0.000000e+00> : vector<256x128xf32>
    %46 = tpu.matmul %43, %45, %cst_34 {dimension_numbers = #tpu.dot_dimension_numbers<[1], [0], [0], [1], [0, 0, 1, 1], [], []>} : vector<256x4xbf16>, vector<4x128xbf16>, vector<256x128xf32> -> vector<256x128xf32>
    %47 = arith.addf %41, %46 : vector<256x128xf32>
    %48 = vector.extract_strided_slice %4 {offsets = [2, 1, 0], sizes = [16, 16, 4], strides = [1, 1, 1]} : vector<18x18x4xbf16> to vector<16x16x4xbf16>
    %49 = vector.shape_cast %48 : vector<16x16x4xbf16> to vector<256x4xbf16>
    %c2_35 = arith.constant 2 : index
    %c1_36 = arith.constant 1 : index
    %c0_37 = arith.constant 0 : index
    %c0_38 = arith.constant 0 : index
    %50 = vector.load %arg3[%c2_35, %c1_36, %c0_37, %c0_38] : memref<3x3x4x128xbf16, #tpu.memory_space<vmem>>, vector<1x1x4x128xbf16>
    %51 = vector.shape_cast %50 : vector<1x1x4x128xbf16> to vector<4x128xbf16>
    %cst_39 = arith.constant dense<0.000000e+00> : vector<256x128xf32>
    %52 = tpu.matmul %49, %51, %cst_39 {dimension_numbers = #tpu.dot_dimension_numbers<[1], [0], [0], [1], [0, 0, 1, 1], [], []>} : vector<256x4xbf16>, vector<4x128xbf16>, vector<256x128xf32> -> vector<256x128xf32>
    %53 = arith.addf %47, %52 : vector<256x128xf32>
    %54 = vector.extract_strided_slice %4 {offsets = [2, 2, 0], sizes = [16, 16, 4], strides = [1, 1, 1]} : vector<18x18x4xbf16> to vector<16x16x4xbf16>
    %55 = vector.shape_cast %54 : vector<16x16x4xbf16> to vector<256x4xbf16>
    %c2_40 = arith.constant 2 : index
    %c2_41 = arith.constant 2 : index
    %c0_42 = arith.constant 0 : index
    %c0_43 = arith.constant 0 : index
    %56 = vector.load %arg3[%c2_40, %c2_41, %c0_42, %c0_43] : memref<3x3x4x128xbf16, #tpu.memory_space<vmem>>, vector<1x1x4x128xbf16>
    %57 = vector.shape_cast %56 : vector<1x1x4x128xbf16> to vector<4x128xbf16>
    %cst_44 = arith.constant dense<0.000000e+00> : vector<256x128xf32>
    %58 = tpu.matmul %55, %57, %cst_44 {dimension_numbers = #tpu.dot_dimension_numbers<[1], [0], [0], [1], [0, 0, 1, 1], [], []>} : vector<256x4xbf16>, vector<4x128xbf16>, vector<256x128xf32> -> vector<256x128xf32>
    %59 = arith.addf %53, %58 : vector<256x128xf32>
    %c0_i32 = arith.constant 0 : i32
    %60 = arith.cmpi eq, %arg1, %c0_i32 : i32
    %61 = arith.extui %60 : i1 to i32
    %c0_i32_45 = arith.constant 0 : i32
    %62 = arith.cmpi ne, %61, %c0_i32_45 : i32
    scf.if %62 {
      %cst_60 = arith.constant 0.000000e+00 : f32
      %79 = vector.broadcast %cst_60 : f32 to vector<8x128xf32>
      %c0_61 = arith.constant 0 : index
      %c0_62 = arith.constant 0 : index
      %c0_63 = arith.constant 0 : index
      %80 = vector.load %arg4[%c0_61, %c0_62, %c0_63] : memref<1x8x128xf32, #tpu.memory_space<vmem>>, vector<1x8x128xf32>
      %81 = vector.shape_cast %80 : vector<1x8x128xf32> to vector<8x128xf32>
      %82 = vector.shape_cast %79 : vector<8x128xf32> to vector<1x8x128xf32>
      tpu.vector_store %arg4[%c0_61, %c0_62, %c0_63], %82 {strides = array<i32>} : memref<1x8x128xf32, #tpu.memory_space<vmem>>, vector<1x8x128xf32>,
      %cst_64 = arith.constant 0.000000e+00 : f32
      %83 = vector.broadcast %cst_64 : f32 to vector<8x128xf32>
      %c0_65 = arith.constant 0 : index
      %c0_66 = arith.constant 0 : index
      %c0_67 = arith.constant 0 : index
      %84 = vector.load %arg5[%c0_65, %c0_66, %c0_67] : memref<1x8x128xf32, #tpu.memory_space<vmem>>, vector<1x8x128xf32>
      %85 = vector.shape_cast %84 : vector<1x8x128xf32> to vector<8x128xf32>
      %86 = vector.shape_cast %83 : vector<8x128xf32> to vector<1x8x128xf32>
      tpu.vector_store %arg5[%c0_65, %c0_66, %c0_67], %86 {strides = array<i32>} : memref<1x8x128xf32, #tpu.memory_space<vmem>>, vector<1x8x128xf32>,
    } else {
    }
    %63 = vector.shape_cast %59 : vector<256x128xf32> to vector<32x8x128xf32>
    %c0_46 = arith.constant 0 : index
    %c0_47 = arith.constant 0 : index
    %c0_48 = arith.constant 0 : index
    %64 = vector.load %arg4[%c0_46, %c0_47, %c0_48] : memref<1x8x128xf32, #tpu.memory_space<vmem>>, vector<1x8x128xf32>
    %65 = vector.shape_cast %64 : vector<1x8x128xf32> to vector<8x128xf32>
    %cst_49 = arith.constant dense<0.000000e+00> : vector<8x128xf32>
    %66 = vector.multi_reduction <add>, %63, %cst_49 [0] : vector<32x8x128xf32> to vector<8x128xf32>
    %67 = arith.addf %65, %66 : vector<8x128xf32>
    %c0_50 = arith.constant 0 : index
    %c0_51 = arith.constant 0 : index
    %c0_52 = arith.constant 0 : index
    %68 = vector.load %arg4[%c0_50, %c0_51, %c0_52] : memref<1x8x128xf32, #tpu.memory_space<vmem>>, vector<1x8x128xf32>
    %69 = vector.shape_cast %68 : vector<1x8x128xf32> to vector<8x128xf32>
    %70 = vector.shape_cast %67 : vector<8x128xf32> to vector<1x8x128xf32>
    tpu.vector_store %arg4[%c0_50, %c0_51, %c0_52], %70 {strides = array<i32>} : memref<1x8x128xf32, #tpu.memory_space<vmem>>, vector<1x8x128xf32>,
    %c0_53 = arith.constant 0 : index
    %c0_54 = arith.constant 0 : index
    %c0_55 = arith.constant 0 : index
    %71 = vector.load %arg5[%c0_53, %c0_54, %c0_55] : memref<1x8x128xf32, #tpu.memory_space<vmem>>, vector<1x8x128xf32>
    %72 = vector.shape_cast %71 : vector<1x8x128xf32> to vector<8x128xf32>
    %73 = arith.mulf %63, %63 : vector<32x8x128xf32>
    %cst_56 = arith.constant dense<0.000000e+00> : vector<8x128xf32>
    %74 = vector.multi_reduction <add>, %73, %cst_56 [0] : vector<32x8x128xf32> to vector<8x128xf32>
    %75 = arith.addf %72, %74 : vector<8x128xf32>
    %c0_57 = arith.constant 0 : index
    %c0_58 = arith.constant 0 : index
    %c0_59 = arith.constant 0 : index
    %76 = vector.load %arg5[%c0_57, %c0_58, %c0_59] : memref<1x8x128xf32, #tpu.memory_space<vmem>>, vector<1x8x128xf32>
    %77 = vector.shape_cast %76 : vector<1x8x128xf32> to vector<8x128xf32>
    %78 = vector.shape_cast %75 : vector<8x128xf32> to vector<1x8x128xf32>
    tpu.vector_store %arg5[%c0_57, %c0_58, %c0_59], %78 {strides = array<i32>} : memref<1x8x128xf32, #tpu.memory_space<vmem>>, vector<1x8x128xf32>,
    return
  }
  func.func @transform_0(%arg0: i32, %arg1: i32) -> (i32, i32, i32, i32) {
    %c0_i32 = arith.constant 0 : i32
    %c0_i32_0 = arith.constant 0 : i32
    %c0_i32_1 = arith.constant 0 : i32
    %c0_i32_2 = arith.constant 0 : i32
    return %arg0, %c0_i32, %c0_i32_0, %c0_i32_1 : i32, i32, i32, i32
  }
  func.func @transform_1(%arg0: i32, %arg1: i32) -> (i32, i32, i32, i32) {
    %c0_i32 = arith.constant 0 : i32
    %c0_i32_0 = arith.constant 0 : i32
    %c0_i32_1 = arith.constant 0 : i32
    %c0_i32_2 = arith.constant 0 : i32
    %c0_i32_3 = arith.constant 0 : i32
    return %c0_i32, %c0_i32_0, %c0_i32_1, %c0_i32_2 : i32, i32, i32, i32
  }
  func.func @transform_2(%arg0: i32, %arg1: i32) -> (i32, i32, i32) {
    %c0_i32 = arith.constant 0 : i32
    %c0_i32_0 = arith.constant 0 : i32
    %c0_i32_1 = arith.constant 0 : i32
    return %arg0, %c0_i32, %c0_i32_0 : i32, i32, i32
  }
  func.func @transform_3(%arg0: i32, %arg1: i32) -> (i32, i32, i32) {
    %c0_i32 = arith.constant 0 : i32
    %c0_i32_0 = arith.constant 0 : i32
    %c0_i32_1 = arith.constant 0 : i32
    return %arg0, %c0_i32, %c0_i32_0 : i32, i32, i32
  }
}

</mosaic_0001>

<llo_original>
// kernel: tpu_custom_call.1
$region0: #{tpu_custom_call.1}
  #allocation0 [shape = 'u32[]', space=smem, size = 0x4, offset = 0x4, fixed_abs, tag = 'smem constant byte address 0x4 - core index']
  #allocation1 [shape = 'u32[144,128]{1,0:T(1,128)}', space=vmem, size = 0x12000, scoped, tag = 'internal scratch']
  %s0 = inlined_call_operand.vmem [shape: bf16[2,18,18,4], index: 0, kind: input, shape index: {}]
  %s1 = inlined_call_operand.vmem [shape: bf16[3,3,4,128], index: 1, kind: input, shape index: {}]
  %s2 = inlined_call_operand.hbm [shape: f32[2,8,128], index: 2, kind: output, shape index: {0}]
  %s3 = inlined_call_operand.hbm [shape: f32[2,8,128], index: 3, kind: output, shape index: {1}]
  %4 = xla_tuple %s2, %s3
  %s5 = sld [smem:[#allocation0]]
  $region53: #{tpu_custom_call.1} parent=0
    _
  %s7 = ssub.s32 1, %s5
  %s8 = scalar_select 0, %s7, %s5
  $region1: #{tpu_custom_call.1} parent=0
    #allocation2 [shape = 'u8[8192]{0}', space=vmem, size = 0x2000, scoped, tag = 'output window, operand 0']
    #allocation3 [shape = 's32[2]{0}', space=sflag, size = 0x8, scoped, tag = 'scoped memory for tpu_custom_call.1']
    #allocation4 [shape = 'u8[8192]{0}', space=vmem, size = 0x2000, scoped, tag = 'output window, operand 1']
    #allocation5 [shape = 's32[2]{0}', space=sflag, size = 0x8, scoped, tag = 'scoped memory for tpu_custom_call.1']
    %9 = vsyncpa [#allocation3], 0
    %s10 = scalar_lea.sflag [#allocation3], 1
    %11 = vsyncpa %s10, 0
    %12 = vsyncpa [#allocation5], 0
    %s13 = scalar_lea.sflag [#allocation5], 1
    %14 = vsyncpa %s13, 0
    loop: start=0, step=1, limit=4
    $region2: #{tpu_custom_call.1} parent=1 // loop_pre_header
      _
    $region3: #{tpu_custom_call.1} parent=1 // loop_header
      %s16 = sphi 0, %s20
      %p17 = scmp.ge.s32.totalorder %s16, 4
      %s23 = sphi 0, %s35
      %s24 = sphi 0, %s31
      %s25 = sphi 0, %s23
      %s26 = sphi 0, %s24
      %s27 = sphi 0, %s25
      %s28 = sphi 0, %s26
      %s38 = sphi 0, %s40
      %s41 = sphi 0, %s38
      %s42 = sphi 0, %s41
      %s58 = sphi 0, %s42
      %s62 = sphi 0, %s62
      %s64 = sphi 0, %s62
      %s65 = sphi 0, %s64
      %s79 = sphi 0, %s65
      %s85 = sphi 0, %s87
      %s88 = sphi 0, %s85
      %s89 = sphi 0, %s88
      %s105 = sphi 0, %s89
      %s111 = sphi 0, %s113
      %s114 = sphi 0, %s111
      %s115 = sphi 0, %s114
      %s131 = sphi 0, %s115
    $region4: #{tpu_custom_call.1} parent=1 // loop_header_branch
      %19 = sbr.rel (%p17) target = $region8
    $region5: #{tpu_custom_call.1} parent=1 // loop_body
      %s21 = ssub.s32 %s16, 1
      %s22 = ssub.s32 %s16, 2
      %s29 = sadd.s32 1, %s24
      %p30 = scmp.ge.s32.totalorder %s29, 1
      %s31 = scalar_select %p30, 0, %s29
      %s32 = sadd.s32 1, %s23
      %s33 = scalar_select %p30, %s32, %s23
      %p34 = scmp.ge.s32.totalorder %s33, 2
      %s35 = scalar_select %p34, 0, %s33
      %s36 = ssub.s32 %s23, %s35
      %p37 = scmp.eq.s32.totalorder %s36, 0
      %s39 = sadd.s32 %s38, 1
      %s40 = scalar_select %p37, %s38, %s39
      %p43 = pneg %p37
      %p44 = scmp.eq.s32.totalorder %s16, 1
      %p45 = por %p43, %p44
      %p46 = scmp.ne.s32.totalorder %s38, %s41
      %p47 = scmp.eq.s32.totalorder %s16, 0
      %p48 = por %p46, %p47
      %p49 = scmp.ne.s32.totalorder %s38, %s41
      %p50 = scmp.eq.s32.totalorder %s21, 1
      %p51 = por %p49, %p50
      %p52 = scmp.ne.s32.totalorder %s41, %s42
      %p53 = scmp.eq.s32.totalorder %s21, 0
      %p54 = por %p52, %p53
      %p55 = scmp.ne.s32.totalorder %s41, %s42
      %p56 = scmp.eq.s32.totalorder %s22, 1
      %p57 = por %p55, %p56
      %p59 = scmp.ne.s32.totalorder %s42, %s58
      %p60 = scmp.eq.s32.totalorder %s22, 0
      %p61 = por %p59, %p60
      %s63 = sadd.s32 %s62, 1
      %p66 = scmp.eq.s32.totalorder %s16, 1
      %p67 = scmp.ne.s32.totalorder %s62, %s64
      %p68 = scmp.eq.s32.totalorder %s16, 0
      %p69 = por %p67, %p68
      %p70 = scmp.ne.s32.totalorder %s62, %s64
      %p71 = scmp.eq.s32.totalorder %s21, 1
      %p72 = por %p70, %p71
      %p73 = scmp.ne.s32.totalorder %s64, %s65
      %p74 = scmp.eq.s32.totalorder %s21, 0
      %p75 = por %p73, %p74
      %p76 = scmp.ne.s32.totalorder %s64, %s65
      %p77 = scmp.eq.s32.totalorder %s22, 1
      %p78 = por %p76, %p77
      %p80 = scmp.ne.s32.totalorder %s65, %s79
      %p81 = scmp.eq.s32.totalorder %s22, 0
      %p82 = por %p80, %p81
      %s83 = ssub.s32 %s23, %s35
      %p84 = scmp.eq.s32.totalorder %s83, 0
      %s86 = sadd.s32 %s85, 1
      %s87 = scalar_select %p84, %s85, %s86
      %p90 = pneg %p84
      %p91 = scmp.eq.s32.totalorder %s16, 1
      %p92 = por %p90, %p91
      %p93 = scmp.ne.s32.totalorder %s85, %s88
      %p94 = scmp.eq.s32.totalorder %s16, 0
      %p95 = por %p93, %p94
      %p96 = scmp.ne.s32.totalorder %s85, %s88
      %p97 = scmp.eq.s32.totalorder %s21, 1
      %p98 = por %p96, %p97
      %p99 = scmp.ne.s32.totalorder %s88, %s89
      %p100 = scmp.eq.s32.totalorder %s21, 0
      %p101 = por %p99, %p100
      %p102 = scmp.ne.s32.totalorder %s88, %s89
      %p103 = scmp.eq.s32.totalorder %s22, 1
      %p104 = por %p102, %p103
      %p106 = scmp.ne.s32.totalorder %s89, %s105
      %p107 = scmp.eq.s32.totalorder %s22, 0
      %p108 = por %p106, %p107
      %s109 = ssub.s32 %s23, %s35
      %p110 = scmp.eq.s32.totalorder %s109, 0
      %s112 = sadd.s32 %s111, 1
      %s113 = scalar_select %p110, %s111, %s112
      %p116 = pneg %p110
      %p117 = scmp.eq.s32.totalorder %s16, 1
      %p118 = por %p116, %p117
      %p119 = scmp.ne.s32.totalorder %s111, %s114
      %p120 = scmp.eq.s32.totalorder %s16, 0
      %p121 = por %p119, %p120
      %p122 = scmp.ne.s32.totalorder %s111, %s114
      %p123 = scmp.eq.s32.totalorder %s21, 1
      %p124 = por %p122, %p123
      %p125 = scmp.ne.s32.totalorder %s114, %s115
      %p126 = scmp.eq.s32.totalorder %s21, 0
      %p127 = por %p125, %p126
      %p128 = scmp.ne.s32.totalorder %s114, %s115
      %p129 = scmp.eq.s32.totalorder %s22, 1
      %p130 = por %p128, %p129
      %p132 = scmp.ne.s32.totalorder %s115, %s131
      %p133 = scmp.eq.s32.totalorder %s22, 0
      %p134 = por %p132, %p133
      %p135 = scmp.le.s32.totalorder 1, %s16
      %p136 = scmp.lt.s32.totalorder %s16, 3
      %p137 = pnand %p135, %p136
      %p138 = pneg %p137
      // Predicated region
      $region9: #{tpu_custom_call.1} parent=5 // pred_check
        _
      $region10: #{tpu_custom_call.1} parent=5 // pred_check_branch
        %140 = sbr.rel (%p137) target = $region12
      $region11: #{tpu_custom_call.1} parent=5 // pred_region
        %s141 = ssub.s32 %s16, 1
        // Predicated region
        $region13: #{tpu_custom_call.1} parent=11 // pred_check
          %p142 = pneg %p75
        $region14: #{tpu_custom_call.1} parent=11 // pred_check_branch
          %144 = sbr.rel (%p142) target = $region16
        $region15: #{tpu_custom_call.1} parent=11 // pred_region
          _
        $region16: #{tpu_custom_call.1} parent=11 // pred_fallthru
          _
      $region12: #{tpu_custom_call.1} parent=5 // pred_fallthru
        _
      %p145 = scmp.lt.s32.totalorder %s16, 2
      // Predicated region
      $region17: #{tpu_custom_call.1} parent=5 // pred_check
        %p146 = pneg %p145
      $region18: #{tpu_custom_call.1} parent=5 // pred_check_branch
        %148 = sbr.rel (%p146) target = $region20
      $region19: #{tpu_custom_call.1} parent=5 // pred_region
        // Predicated region
        $region21: #{tpu_custom_call.1} parent=19 // pred_check
          %p149 = pneg %p48
        $region22: #{tpu_custom_call.1} parent=19 // pred_check_branch
          %151 = sbr.rel (%p149) target = $region24
        $region23: #{tpu_custom_call.1} parent=19 // pred_region
          %p152 = scmp.lt.s32.totalorder %s23, 1
          %s153 = scalar_select %p152, %s23, 1
          %s154 = smul.addr %s153, 54
          %s155 = smul.addr %s154, 4
          %s156 = scalar_lea.vmem %s0, %s155
        $region24: #{tpu_custom_call.1} parent=19 // pred_fallthru
          _
      $region20: #{tpu_custom_call.1} parent=5 // pred_fallthru
        _
      %p157 = scmp.le.s32.totalorder 1, %s16
      %p158 = scmp.lt.s32.totalorder %s16, 3
      %p159 = pnand %p157, %p158
      %p160 = pneg %p159
      // Predicated region
      $region25: #{tpu_custom_call.1} parent=5 // pred_check
        _
      $region26: #{tpu_custom_call.1} parent=5 // pred_check_branch
        %162 = sbr.rel (%p159) target = $region28
      $region27: #{tpu_custom_call.1} parent=5 // pred_region
        %s163 = ssub.s32 %s16, 1
        %p164 = scmp.lt.s32.totalorder %s25, 1
        %s165 = scalar_select %p164, %s25, 1
        %s166 = smul.addr %s165, 54
        %s167 = smul.addr %s166, 4
        %s168 = scalar_lea.vmem %s0, %s167
        %p169 = pneg %p54
        %p170 = pneg %p51
        %p171 = pneg %p75
        %p172 = pneg %p72
        %p173 = pneg %p101
        %p174 = pneg %p98
        %s175 = sand.u32 %s88, 1
        %s176 = scalar_lea.sflag [#allocation3], %s175
        %s177 = sand.u32 %s88, 1
        %s178 = smul.addr %s177, 8
        %s179 = scalar_lea.vmem [#allocation2], %s178
        %p180 = pneg %p127
        %p181 = pneg %p124
        %s182 = sand.u32 %s114, 1
        %s183 = scalar_lea.sflag [#allocation5], %s182
        %s184 = sand.u32 %s114, 1
        %s185 = smul.addr %s184, 8
        %s186 = scalar_lea.vmem [#allocation4], %s185
        %p187 = scmp.lt.s32.totalorder %s25, 1
        %s188 = scalar_select %p187, %s25, 1
        %s189 = smul.addr %s188, 54
        %s190 = smul.addr %s189, 4
        %s191 = scalar_lea.vmem %s0, %s190
        %s193 = smul.u32 %s26, 16
        %s194 = smul.u32 %s193, 3
        %s195 = smul.addr %s194, 4
        %s196 = scalar_lea.vmem %s191, %s195
        %v197 = vld [vmem:[%s196] sm:$0xf]
        %v198 = vld [vmem:[%s196 + $0x4] sm:$0xf]
        %v199 = vld [vmem:[%s196 + $0x8] sm:$0x1]
        %v200 = vld [vmem:[%s196 + $0xc] sm:$0xf]
        %v201 = vld [vmem:[%s196 + $0x10] sm:$0xf]
        %v202 = vld [vmem:[%s196 + $0x14] sm:$0x1]
        %v203 = vld [vmem:[%s196 + $0x18] sm:$0xf]
        %v204 = vld [vmem:[%s196 + $0x1c] sm:$0xf]
        %v205 = vld [vmem:[%s196 + $0x20] sm:$0x1]
        %v206 = vld [vmem:[%s196 + $0x24] sm:$0xf]
        %v207 = vld [vmem:[%s196 + $0x28] sm:$0xf]
        %v208 = vld [vmem:[%s196 + $0x2c] sm:$0x1]
        %v209 = vld [vmem:[%s196 + $0x30] sm:$0xf]
        %v210 = vld [vmem:[%s196 + $0x34] sm:$0xf]
        %v211 = vld [vmem:[%s196 + $0x38] sm:$0x1]
        %v212 = vld [vmem:[%s196 + $0x3c] sm:$0xf]
        %v213 = vld [vmem:[%s196 + $0x40] sm:$0xf]
        %v214 = vld [vmem:[%s196 + $0x44] sm:$0x1]
        %v215 = vld [vmem:[%s196 + $0x48] sm:$0xf]
        %v216 = vld [vmem:[%s196 + $0x4c] sm:$0xf]
        %v217 = vld [vmem:[%s196 + $0x50] sm:$0x1]
        %v218 = vld [vmem:[%s196 + $0x54] sm:$0xf]
        %v219 = vld [vmem:[%s196 + $0x58] sm:$0xf]
        %v220 = vld [vmem:[%s196 + $0x5c] sm:$0x1]
        %v221 = vld [vmem:[%s196 + $0x60] sm:$0xf]
        %v222 = vld [vmem:[%s196 + $0x64] sm:$0xf]
        %v223 = vld [vmem:[%s196 + $0x68] sm:$0x1]
        %v224 = vld [vmem:[%s196 + $0x6c] sm:$0xf]
        %v225 = vld [vmem:[%s196 + $0x70] sm:$0xf]
        %v226 = vld [vmem:[%s196 + $0x74] sm:$0x1]
        %v227 = vld [vmem:[%s196 + $0x78] sm:$0xf]
        %v228 = vld [vmem:[%s196 + $0x7c] sm:$0xf]
        %v229 = vld [vmem:[%s196 + $0x80] sm:$0x1]
        %v230 = vld [vmem:[%s196 + $0x84] sm:$0xf]
        %v231 = vld [vmem:[%s196 + $0x88] sm:$0xf]
        %v232 = vld [vmem:[%s196 + $0x8c] sm:$0x1]
        %v233 = vld [vmem:[%s196 + $0x90] sm:$0xf]
        %v234 = vld [vmem:[%s196 + $0x94] sm:$0xf]
        %v235 = vld [vmem:[%s196 + $0x98] sm:$0x1]
        %v236 = vld [vmem:[%s196 + $0x9c] sm:$0xf]
        %v237 = vld [vmem:[%s196 + $0xa0] sm:$0xf]
        %v238 = vld [vmem:[%s196 + $0xa4] sm:$0x1]
        %v239 = vld [vmem:[%s196 + $0xa8] sm:$0xf]
        %v240 = vld [vmem:[%s196 + $0xac] sm:$0xf]
        %v241 = vld [vmem:[%s196 + $0xb0] sm:$0x1]
        %v242 = vld [vmem:[%s196 + $0xb4] sm:$0xf]
        %v243 = vld [vmem:[%s196 + $0xb8] sm:$0xf]
        %v244 = vld [vmem:[%s196 + $0xbc] sm:$0x1]
        %v245 = vld [vmem:[%s196 + $0xc0] sm:$0xf]
        %v246 = vld [vmem:[%s196 + $0xc4] sm:$0xf]
        %v247 = vld [vmem:[%s196 + $0xc8] sm:$0x1]
        %v248 = vld [vmem:[%s196 + $0xcc] sm:$0xf]
        %v249 = vld [vmem:[%s196 + $0xd0] sm:$0xf]
        %v250 = vld [vmem:[%s196 + $0xd4] sm:$0x1]
        %v251 = vld [vmem:[%s1] sm:$0x3]
        %vm252 = vsmask.f32 3328
        %vm253 = vsmask.f32 7440
        %vm254 = vmor %vm252, %vm253
        %v256 = vshrl.u32 %v197, 16
        %v258 = vrot.slane %v256, 4
        %v259 = vshll.u32 %v197, 16
        %v261 = vrot.slane %v259, 5
        %v262 = vor.u32 %v258, %v261
        %v263 = vrot.slane %v262, 4
        %v265 = vshll.u32 %v198, 16
        %v267 = vrot.slane %v265, 5
        %v268 = vsel %vm254, %v263, %v267
        %v269 = vshrl.u32 %v198, 16
        %v271 = vrot.slane %v269, 4
        %v272 = vor.u32 %v271, %v267
        %v273 = vrot.slane %v272, 4
        %v275 = vshll.u32 %v199, 16
        %v277 = vrot.slane %v275, 5
        %v278 = vsel %vm254, %v273, %v277
        %v280 = vshrl.u32 %v200, 16
        %v282 = vrot.slane %v280, 4
        %v283 = vshll.u32 %v200, 16
        %v285 = vrot.slane %v283, 5
        %v286 = vor.u32 %v282, %v285
        %v287 = vrot.slane %v286, 4
        %v289 = vshll.u32 %v201, 16
        %v291 = vrot.slane %v289, 5
        %v292 = vsel %vm254, %v287, %v291
        %v293 = vshrl.u32 %v201, 16
        %v295 = vrot.slane %v293, 4
        %v296 = vor.u32 %v295, %v291
        %v297 = vrot.slane %v296, 4
        %v299 = vshll.u32 %v202, 16
        %v301 = vrot.slane %v299, 5
        %v302 = vsel %vm254, %v297, %v301
        %v304 = vshrl.u32 %v203, 16
        %v306 = vrot.slane %v304, 4
        %v307 = vshll.u32 %v203, 16
        %v309 = vrot.slane %v307, 5
        %v310 = vor.u32 %v306, %v309
        %v311 = vrot.slane %v310, 4
        %v313 = vshll.u32 %v204, 16
        %v315 = vrot.slane %v313, 5
        %v316 = vsel %vm254, %v311, %v315
        %v317 = vshrl.u32 %v204, 16
        %v319 = vrot.slane %v317, 4
        %v320 = vor.u32 %v319, %v315
        %v321 = vrot.slane %v320, 4
        %v323 = vshll.u32 %v205, 16
        %v325 = vrot.slane %v323, 5
        %v326 = vsel %vm254, %v321, %v325
        %v328 = vshrl.u32 %v206, 16
        %v330 = vrot.slane %v328, 4
        %v331 = vshll.u32 %v206, 16
        %v333 = vrot.slane %v331, 5
        %v334 = vor.u32 %v330, %v333
        %v335 = vrot.slane %v334, 4
        %v337 = vshll.u32 %v207, 16
        %v339 = vrot.slane %v337, 5
        %v340 = vsel %vm254, %v335, %v339
        %v341 = vshrl.u32 %v207, 16
        %v343 = vrot.slane %v341, 4
        %v344 = vor.u32 %v343, %v339
        %v345 = vrot.slane %v344, 4
        %v347 = vshll.u32 %v208, 16
        %v349 = vrot.slane %v347, 5
        %v350 = vsel %vm254, %v345, %v349
        %v352 = vshrl.u32 %v209, 16
        %v354 = vrot.slane %v352, 4
        %v355 = vshll.u32 %v209, 16
        %v357 = vrot.slane %v355, 5
        %v358 = vor.u32 %v354, %v357
        %v359 = vrot.slane %v358, 4
        %v361 = vshll.u32 %v210, 16
        %v363 = vrot.slane %v361, 5
        %v364 = vsel %vm254, %v359, %v363
        %v365 = vshrl.u32 %v210, 16
        %v367 = vrot.slane %v365, 4
        %v368 = vor.u32 %v367, %v363
        %v369 = vrot.slane %v368, 4
        %v371 = vshll.u32 %v211, 16
        %v373 = vrot.slane %v371, 5
        %v374 = vsel %vm254, %v369, %v373
        %v376 = vshrl.u32 %v212, 16
        %v378 = vrot.slane %v376, 4
        %v379 = vshll.u32 %v212, 16
        %v381 = vrot.slane %v379, 5
        %v382 = vor.u32 %v378, %v381
        %v383 = vrot.slane %v382, 4
        %v385 = vshll.u32 %v213, 16
        %v387 = vrot.slane %v385, 5
        %v388 = vsel %vm254, %v383, %v387
        %v389 = vshrl.u32 %v213, 16
        %v391 = vrot.slane %v389, 4
        %v392 = vor.u32 %v391, %v387
        %v393 = vrot.slane %v392, 4
        %v395 = vshll.u32 %v214, 16
        %v397 = vrot.slane %v395, 5
        %v398 = vsel %vm254, %v393, %v397
        %v400 = vshrl.u32 %v215, 16
        %v402 = vrot.slane %v400, 4
        %v403 = vshll.u32 %v215, 16
        %v405 = vrot.slane %v403, 5
        %v406 = vor.u32 %v402, %v405
        %v407 = vrot.slane %v406, 4
        %v409 = vshll.u32 %v216, 16
        %v411 = vrot.slane %v409, 5
        %v412 = vsel %vm254, %v407, %v411
        %v413 = vshrl.u32 %v216, 16
        %v415 = vrot.slane %v413, 4
        %v416 = vor.u32 %v415, %v411
        %v417 = vrot.slane %v416, 4
        %v419 = vshll.u32 %v217, 16
        %v421 = vrot.slane %v419, 5
        %v422 = vsel %vm254, %v417, %v421
        %v424 = vshrl.u32 %v218, 16
        %v426 = vrot.slane %v424, 4
        %v427 = vshll.u32 %v218, 16
        %v429 = vrot.slane %v427, 5
        %v430 = vor.u32 %v426, %v429
        %v431 = vrot.slane %v430, 4
        %v433 = vshll.u32 %v219, 16
        %v435 = vrot.slane %v433, 5
        %v436 = vsel %vm254, %v431, %v435
        %v437 = vshrl.u32 %v219, 16
        %v439 = vrot.slane %v437, 4
        %v440 = vor.u32 %v439, %v435
        %v441 = vrot.slane %v440, 4
        %v443 = vshll.u32 %v220, 16
        %v445 = vrot.slane %v443, 5
        %v446 = vsel %vm254, %v441, %v445
        %v448 = vshrl.u32 %v221, 16
        %v450 = vrot.slane %v448, 4
        %v451 = vshll.u32 %v221, 16
        %v453 = vrot.slane %v451, 5
        %v454 = vor.u32 %v450, %v453
        %v455 = vrot.slane %v454, 4
        %v457 = vshll.u32 %v222, 16
        %v459 = vrot.slane %v457, 5
        %v460 = vsel %vm254, %v455, %v459
        %v461 = vshrl.u32 %v222, 16
        %v463 = vrot.slane %v461, 4
        %v464 = vor.u32 %v463, %v459
        %v465 = vrot.slane %v464, 4
        %v467 = vshll.u32 %v223, 16
        %v469 = vrot.slane %v467, 5
        %v470 = vsel %vm254, %v465, %v469
        %v472 = vshrl.u32 %v224, 16
        %v474 = vrot.slane %v472, 4
        %v475 = vshll.u32 %v224, 16
        %v477 = vrot.slane %v475, 5
        %v478 = vor.u32 %v474, %v477
        %v479 = vrot.slane %v478, 4
        %v481 = vshll.u32 %v225, 16
        %v483 = vrot.slane %v481, 5
        %v484 = vsel %vm254, %v479, %v483
        %v485 = vshrl.u32 %v225, 16
        %v487 = vrot.slane %v485, 4
        %v488 = vor.u32 %v487, %v483
        %v489 = vrot.slane %v488, 4
        %v491 = vshll.u32 %v226, 16
        %v493 = vrot.slane %v491, 5
        %v494 = vsel %vm254, %v489, %v493
        %v496 = vshrl.u32 %v227, 16
        %v498 = vrot.slane %v496, 4
        %v499 = vshll.u32 %v227, 16
        %v501 = vrot.slane %v499, 5
        %v502 = vor.u32 %v498, %v501
        %v503 = vrot.slane %v502, 4
        %v505 = vshll.u32 %v228, 16
        %v507 = vrot.slane %v505, 5
        %v508 = vsel %vm254, %v503, %v507
        %v509 = vshrl.u32 %v228, 16
        %v511 = vrot.slane %v509, 4
        %v512 = vor.u32 %v511, %v507
        %v513 = vrot.slane %v512, 4
        %v515 = vshll.u32 %v229, 16
        %v517 = vrot.slane %v515, 5
        %v518 = vsel %vm254, %v513, %v517
        %v520 = vshrl.u32 %v230, 16
        %v522 = vrot.slane %v520, 4
        %v523 = vshll.u32 %v230, 16
        %v525 = vrot.slane %v523, 5
        %v526 = vor.u32 %v522, %v525
        %v527 = vrot.slane %v526, 4
        %v529 = vshll.u32 %v231, 16
        %v531 = vrot.slane %v529, 5
        %v532 = vsel %vm254, %v527, %v531
        %v533 = vshrl.u32 %v231, 16
        %v535 = vrot.slane %v533, 4
        %v536 = vor.u32 %v535, %v531
        %v537 = vrot.slane %v536, 4
        %v539 = vshll.u32 %v232, 16
        %v541 = vrot.slane %v539, 5
        %v542 = vsel %vm254, %v537, %v541
        %v544 = vshrl.u32 %v233, 16
        %v546 = vrot.slane %v544, 4
        %v547 = vshll.u32 %v233, 16
        %v549 = vrot.slane %v547, 5
        %v550 = vor.u32 %v546, %v549
        %v551 = vrot.slane %v550, 4
        %v553 = vshll.u32 %v234, 16
        %v555 = vrot.slane %v553, 5
        %v556 = vsel %vm254, %v551, %v555
        %v557 = vshrl.u32 %v234, 16
        %v559 = vrot.slane %v557, 4
        %v560 = vor.u32 %v559, %v555
        %v561 = vrot.slane %v560, 4
        %v563 = vshll.u32 %v235, 16
        %v565 = vrot.slane %v563, 5
        %v566 = vsel %vm254, %v561, %v565
        %v568 = vshrl.u32 %v236, 16
        %v570 = vrot.slane %v568, 4
        %v571 = vshll.u32 %v236, 16
        %v573 = vrot.slane %v571, 5
        %v574 = vor.u32 %v570, %v573
        %v575 = vrot.slane %v574, 4
        %v577 = vshll.u32 %v237, 16
        %v579 = vrot.slane %v577, 5
        %v580 = vsel %vm254, %v575, %v579
        %v581 = vshrl.u32 %v237, 16
        %v583 = vrot.slane %v581, 4
        %v584 = vor.u32 %v583, %v579
        %v585 = vrot.slane %v584, 4
        %v587 = vshll.u32 %v238, 16
        %v589 = vrot.slane %v587, 5
        %v590 = vsel %vm254, %v585, %v589
        %v592 = vshrl.u32 %v239, 16
        %v594 = vrot.slane %v592, 4
        %v595 = vshll.u32 %v239, 16
        %v597 = vrot.slane %v595, 5
        %v598 = vor.u32 %v594, %v597
        %v599 = vrot.slane %v598, 4
        %v601 = vshll.u32 %v240, 16
        %v603 = vrot.slane %v601, 5
        %v604 = vsel %vm254, %v599, %v603
        %v605 = vshrl.u32 %v240, 16
        %v607 = vrot.slane %v605, 4
        %v608 = vor.u32 %v607, %v603
        %v609 = vrot.slane %v608, 4
        %v611 = vshll.u32 %v241, 16
        %v613 = vrot.slane %v611, 5
        %v614 = vsel %vm254, %v609, %v613
        %v616 = vshrl.u32 %v242, 16
        %v618 = vrot.slane %v616, 4
        %v619 = vshll.u32 %v242, 16
        %v621 = vrot.slane %v619, 5
        %v622 = vor.u32 %v618, %v621
        %v623 = vrot.slane %v622, 4
        %v625 = vshll.u32 %v243, 16
        %v627 = vrot.slane %v625, 5
        %v628 = vsel %vm254, %v623, %v627
        %v629 = vshrl.u32 %v243, 16
        %v631 = vrot.slane %v629, 4
        %v632 = vor.u32 %v631, %v627
        %v633 = vrot.slane %v632, 4
        %v635 = vshll.u32 %v244, 16
        %v637 = vrot.slane %v635, 5
        %v638 = vsel %vm254, %v633, %v637
        %s639 = scalar_lea.vmem %s1, 2
        %v640 = vld [vmem:[%s639] sm:$0x3]
        %v641 = vunpack.c.l.b16 %v268
        %v642 = vunpack.c.l.b16 %v278
        %v643 = vunpack.c.l.b16 %v292
        %v644 = vunpack.c.l.b16 %v302
        %v645 = vunpack.c.l.b16 %v316
        %v646 = vunpack.c.l.b16 %v326
        %v647 = vunpack.c.l.b16 %v340
        %v648 = vunpack.c.l.b16 %v350
        %v649 = vunpack.c.l.b16 %v364
        %v650 = vunpack.c.l.b16 %v374
        %v651 = vunpack.c.l.b16 %v388
        %v652 = vunpack.c.l.b16 %v398
        %v653 = vunpack.c.l.b16 %v412
        %v654 = vunpack.c.l.b16 %v422
        %v655 = vunpack.c.l.b16 %v436
        %v656 = vunpack.c.l.b16 %v446
        %v657 = vunpack.c.l.b16 %v460
        %v658 = vunpack.c.l.b16 %v470
        %v659 = vunpack.c.l.b16 %v484
        %v660 = vunpack.c.l.b16 %v494
        %v661 = vunpack.c.l.b16 %v508
        %v662 = vunpack.c.l.b16 %v518
        %v663 = vunpack.c.l.b16 %v532
        %v664 = vunpack.c.l.b16 %v542
        %v665 = vunpack.c.l.b16 %v556
        %v666 = vunpack.c.l.b16 %v566
        %v667 = vunpack.c.l.b16 %v580
        %v668 = vunpack.c.l.b16 %v590
        %v669 = vunpack.c.l.b16 %v604
        %v670 = vunpack.c.l.b16 %v614
        %v671 = vunpack.c.l.b16 %v628
        %v672 = vunpack.c.l.b16 %v638
        %v673 = vpack.c.b16 %v642, %v641
        %v674 = vpack.c.b16 %v644, %v643
        %v675 = vpack.c.b16 %v646, %v645
        %v676 = vpack.c.b16 %v648, %v647
        %v677 = vpack.c.b16 %v650, %v649
        %v678 = vpack.c.b16 %v652, %v651
        %v679 = vpack.c.b16 %v654, %v653
        %v680 = vpack.c.b16 %v656, %v655
        %v681 = vpack.c.b16 %v658, %v657
        %v682 = vpack.c.b16 %v660, %v659
        %v683 = vpack.c.b16 %v662, %v661
        %v684 = vpack.c.b16 %v664, %v663
        %v685 = vpack.c.b16 %v666, %v665
        %v686 = vpack.c.b16 %v668, %v667
        %v687 = vpack.c.b16 %v670, %v669
        %v688 = vpack.c.b16 %v672, %v671
        %vm689 = vcmask 31744
        %v691 = vsel %vm689, %v673, 0
        %v694 = vsel %vm689, %v674, 0
        %v697 = vsel %vm689, %v675, 0
        %v700 = vsel %vm689, %v676, 0
        %v703 = vsel %vm689, %v677, 0
        %v706 = vsel %vm689, %v678, 0
        %v709 = vsel %vm689, %v679, 0
        %v712 = vsel %vm689, %v680, 0
        %v715 = vsel %vm689, %v681, 0
        %v718 = vsel %vm689, %v682, 0
        %v721 = vsel %vm689, %v683, 0
        %v724 = vsel %vm689, %v684, 0
        %v727 = vsel %vm689, %v685, 0
        %v730 = vsel %vm689, %v686, 0
        %v733 = vsel %vm689, %v687, 0
        %v736 = vsel %vm689, %v688, 0
        %vm738 = vcmask 1041408
        %v740 = vsel %vm738, %v640, 0
        %742 = vmatprep.subr.bf16.mxu0 0
        %743 = vmatpush1.bf16.msra.mxu0 0
        %744 = vmatprep.subr.bf16.mxu0 0
        %745 = vmatpush1.bf16.msra.mxu0 0
        %746 = vmatprep.subr.bf16.mxu0 0
        %747 = vmatpush1.bf16.msra.mxu0 0
        %748 = vmatprep.subr.bf16.mxu0 0
        %749 = vmatpush1.bf16.msra.mxu0 0
        %750 = vmatprep.subr.bf16.mxu0 0
        %751 = vmatpush1.bf16.msra.mxu0 0
        %752 = vmatprep.subr.bf16.mxu0 0
        %753 = vmatpush1.bf16.msra.mxu0 0
        %754 = vmatprep.subr.bf16.mxu0 0
        %755 = vmatpush1.bf16.msra.mxu0 0
        %756 = vmatprep.subr.bf16.mxu0 0
        %757 = vmatpush1.bf16.msra.mxu0 %v740
        %758 = vmatprep.subr.bf16.mxu0 0
        %759 = vmatpush2.bf16.msra.mxu0 0
        %760 = vmatprep.subr.bf16.mxu0 0
        %761 = vmatpush2.bf16.msra.mxu0 0
        %762 = vmatprep.subr.bf16.mxu0 0
        %763 = vmatpush2.bf16.msra.mxu0 0
        %764 = vmatprep.subr.bf16.mxu0 0
        %765 = vmatpush2.bf16.msra.mxu0 0
        %766 = vmatprep.subr.bf16.mxu0 0
        %767 = vmatpush2.bf16.msra.mxu0 0
        %768 = vmatprep.subr.bf16.mxu0 0
        %769 = vmatpush2.bf16.msra.mxu0 0
        %770 = vmatprep.subr.bf16.mxu0 0
        %771 = vmatpush2.bf16.msra.mxu0 0
        %772 = vmatprep.subr.bf16.mxu0 0
        %773 = vmatpush2.bf16.msra.mxu0 0
        %774 = vmatprep.mubr.bf16.mxu0 0
        %775 = vmatmul.mubr.bf16.gmra.mxu0 %v691
        %v776 = vpop.f32.mrf.mxu0
        %v777 = vadd.f32 0.0, %v776
        %v778 = vpop.f32.mrf.mxu0
        %v779 = vpop.f32.mrf.mxu0
        %v780 = vadd.f32 0.0, %v779
        %v781 = vpop.f32.mrf.mxu0
        %782 = vmatprep.mubr.bf16.mxu0 0
        %783 = vmatmul.mubr.bf16.gmra.mxu0 %v694
        %v784 = vpop.f32.mrf.mxu0
        %v785 = vadd.f32 0.0, %v784
        %v786 = vpop.f32.mrf.mxu0
        %v787 = vpop.f32.mrf.mxu0
        %v788 = vadd.f32 0.0, %v787
        %v789 = vpop.f32.mrf.mxu0
        %790 = vmatprep.mubr.bf16.mxu0 0
        %791 = vmatmul.mubr.bf16.gmra.mxu0 %v697
        %v792 = vpop.f32.mrf.mxu0
        %v793 = vadd.f32 0.0, %v792
        %v794 = vpop.f32.mrf.mxu0
        %v795 = vpop.f32.mrf.mxu0
        %v796 = vadd.f32 0.0, %v795
        %v797 = vpop.f32.mrf.mxu0
        %798 = vmatprep.mubr.bf16.mxu0 0
        %799 = vmatmul.mubr.bf16.gmra.mxu0 %v700
        %v800 = vpop.f32.mrf.mxu0
        %v801 = vadd.f32 0.0, %v800
        %v802 = vpop.f32.mrf.mxu0
        %v803 = vpop.f32.mrf.mxu0
        %v804 = vadd.f32 0.0, %v803
        %v805 = vpop.f32.mrf.mxu0
        %806 = vmatprep.mubr.bf16.mxu0 0
        %807 = vmatmul.mubr.bf16.gmra.mxu0 %v703
        %v808 = vpop.f32.mrf.mxu0
        %v809 = vadd.f32 0.0, %v808
        %v810 = vpop.f32.mrf.mxu0
        %v811 = vpop.f32.mrf.mxu0
        %v812 = vadd.f32 0.0, %v811
        %v813 = vpop.f32.mrf.mxu0
        %814 = vmatprep.mubr.bf16.mxu0 0
        %815 = vmatmul.mubr.bf16.gmra.mxu0 %v706
        %v816 = vpop.f32.mrf.mxu0
        %v817 = vadd.f32 0.0, %v816
        %v818 = vpop.f32.mrf.mxu0
        %v819 = vpop.f32.mrf.mxu0
        %v820 = vadd.f32 0.0, %v819
        %v821 = vpop.f32.mrf.mxu0
        %822 = vmatprep.mubr.bf16.mxu0 0
        %823 = vmatmul.mubr.bf16.gmra.mxu0 %v709
        %v824 = vpop.f32.mrf.mxu0
        %v825 = vadd.f32 0.0, %v824
        %v826 = vpop.f32.mrf.mxu0
        %v827 = vpop.f32.mrf.mxu0
        %v828 = vadd.f32 0.0, %v827
        %v829 = vpop.f32.mrf.mxu0
        %830 = vmatprep.mubr.bf16.mxu0 0
        %831 = vmatmul.mubr.bf16.gmra.mxu0 %v712
        %v832 = vpop.f32.mrf.mxu0
        %v833 = vadd.f32 0.0, %v832
        %v834 = vpop.f32.mrf.mxu0
        %v835 = vpop.f32.mrf.mxu0
        %v836 = vadd.f32 0.0, %v835
        %v837 = vpop.f32.mrf.mxu0
        %838 = vmatprep.mubr.bf16.mxu0 0
        %839 = vmatmul.mubr.bf16.gmra.mxu0 %v715
        %v840 = vpop.f32.mrf.mxu0
        %v841 = vadd.f32 0.0, %v840
        %v842 = vpop.f32.mrf.mxu0
        %v843 = vpop.f32.mrf.mxu0
        %v844 = vadd.f32 0.0, %v843
        %v845 = vpop.f32.mrf.mxu0
        %846 = vmatprep.mubr.bf16.mxu0 0
        %847 = vmatmul.mubr.bf16.gmra.mxu0 %v718
        %v848 = vpop.f32.mrf.mxu0
        %v849 = vadd.f32 0.0, %v848
        %v850 = vpop.f32.mrf.mxu0
        %v851 = vpop.f32.mrf.mxu0
        %v852 = vadd.f32 0.0, %v851
        %v853 = vpop.f32.mrf.mxu0
        %854 = vmatprep.mubr.bf16.mxu0 0
        %855 = vmatmul.mubr.bf16.gmra.mxu0 %v721
        %v856 = vpop.f32.mrf.mxu0
        %v857 = vadd.f32 0.0, %v856
        %v858 = vpop.f32.mrf.mxu0
        %v859 = vpop.f32.mrf.mxu0
        %v860 = vadd.f32 0.0, %v859
        %v861 = vpop.f32.mrf.mxu0
        %862 = vmatprep.mubr.bf16.mxu0 0
        %863 = vmatmul.mubr.bf16.gmra.mxu0 %v724
        %v864 = vpop.f32.mrf.mxu0
        %v865 = vadd.f32 0.0, %v864
        %v866 = vpop.f32.mrf.mxu0
        %v867 = vpop.f32.mrf.mxu0
        %v868 = vadd.f32 0.0, %v867
        %v869 = vpop.f32.mrf.mxu0
        %870 = vmatprep.mubr.bf16.mxu0 0
        %871 = vmatmul.mubr.bf16.gmra.mxu0 %v727
        %v872 = vpop.f32.mrf.mxu0
        %v873 = vadd.f32 0.0, %v872
        %v874 = vpop.f32.mrf.mxu0
        %v875 = vpop.f32.mrf.mxu0
        %v876 = vadd.f32 0.0, %v875
        %v877 = vpop.f32.mrf.mxu0
        %878 = vmatprep.mubr.bf16.mxu0 0
        %879 = vmatmul.mubr.bf16.gmra.mxu0 %v730
        %v880 = vpop.f32.mrf.mxu0
        %v881 = vadd.f32 0.0, %v880
        %v882 = vpop.f32.mrf.mxu0
        %v883 = vpop.f32.mrf.mxu0
        %v884 = vadd.f32 0.0, %v883
        %v885 = vpop.f32.mrf.mxu0
        %886 = vmatprep.mubr.bf16.mxu0 0
        %887 = vmatmul.mubr.bf16.gmra.mxu0 %v733
        %v888 = vpop.f32.mrf.mxu0
        %v889 = vadd.f32 0.0, %v888
        %v890 = vpop.f32.mrf.mxu0
        %v891 = vpop.f32.mrf.mxu0
        %v892 = vadd.f32 0.0, %v891
        %v893 = vpop.f32.mrf.mxu0
        %894 = vmatprep.mubr.bf16.mxu0 0
        %895 = vmatmul.mubr.bf16.gmra.mxu0 %v736
        %v896 = vpop.f32.mrf.mxu0
        %v897 = vadd.f32 0.0, %v896
        %v898 = vpop.f32.mrf.mxu0
        %v899 = vpop.f32.mrf.mxu0
        %v900 = vadd.f32 0.0, %v899
        %v901 = vpop.f32.mrf.mxu0
        %902 = vdwg.mxu0
        %v935 = vunpack.c.l.b16 %v197
        %v936 = vunpack.c.l.b16 %v198
        %v937 = vunpack.c.l.b16 %v200
        %v938 = vunpack.c.l.b16 %v201
        %v939 = vunpack.c.l.b16 %v203
        %v940 = vunpack.c.l.b16 %v204
        %v941 = vunpack.c.l.b16 %v206
        %v942 = vunpack.c.l.b16 %v207
        %v943 = vunpack.c.l.b16 %v209
        %v944 = vunpack.c.l.b16 %v210
        %v945 = vunpack.c.l.b16 %v212
        %v946 = vunpack.c.l.b16 %v213
        %v947 = vunpack.c.l.b16 %v215
        %v948 = vunpack.c.l.b16 %v216
        %v949 = vunpack.c.l.b16 %v218
        %v950 = vunpack.c.l.b16 %v219
        %v951 = vunpack.c.l.b16 %v221
        %v952 = vunpack.c.l.b16 %v222
        %v953 = vunpack.c.l.b16 %v224
        %v954 = vunpack.c.l.b16 %v225
        %v955 = vunpack.c.l.b16 %v227
        %v956 = vunpack.c.l.b16 %v228
        %v957 = vunpack.c.l.b16 %v230
        %v958 = vunpack.c.l.b16 %v231
        %v959 = vunpack.c.l.b16 %v233
        %v960 = vunpack.c.l.b16 %v234
        %v961 = vunpack.c.l.b16 %v236
        %v962 = vunpack.c.l.b16 %v237
        %v963 = vunpack.c.l.b16 %v239
        %v964 = vunpack.c.l.b16 %v240
        %v965 = vunpack.c.l.b16 %v242
        %v966 = vunpack.c.l.b16 %v243
        %v967 = vpack.c.b16 %v936, %v935
        %v968 = vpack.c.b16 %v938, %v937
        %v969 = vpack.c.b16 %v940, %v939
        %v970 = vpack.c.b16 %v942, %v941
        %v971 = vpack.c.b16 %v944, %v943
        %v972 = vpack.c.b16 %v946, %v945
        %v973 = vpack.c.b16 %v948, %v947
        %v974 = vpack.c.b16 %v950, %v949
        %v975 = vpack.c.b16 %v952, %v951
        %v976 = vpack.c.b16 %v954, %v953
        %v977 = vpack.c.b16 %v956, %v955
        %v978 = vpack.c.b16 %v958, %v957
        %v979 = vpack.c.b16 %v960, %v959
        %v980 = vpack.c.b16 %v962, %v961
        %v981 = vpack.c.b16 %v964, %v963
        %v982 = vpack.c.b16 %v966, %v965
        %v984 = vsel %vm689, %v967, 0
        %v987 = vsel %vm689, %v968, 0
        %v990 = vsel %vm689, %v969, 0
        %v993 = vsel %vm689, %v970, 0
        %v996 = vsel %vm689, %v971, 0
        %v999 = vsel %vm689, %v972, 0
        %v1002 = vsel %vm689, %v973, 0
        %v1005 = vsel %vm689, %v974, 0
        %v1008 = vsel %vm689, %v975, 0
        %v1011 = vsel %vm689, %v976, 0
        %v1014 = vsel %vm689, %v977, 0
        %v1017 = vsel %vm689, %v978, 0
        %v1020 = vsel %vm689, %v979, 0
        %v1023 = vsel %vm689, %v980, 0
        %v1026 = vsel %vm689, %v981, 0
        %v1029 = vsel %vm689, %v982, 0
        %v1032 = vsel %vm738, %v251, 0
        %1034 = vmatprep.subr.bf16.mxu0 0
        %1035 = vmatpush1.bf16.msra.mxu0 0
        %1036 = vmatprep.subr.bf16.mxu0 0
        %1037 = vmatpush1.bf16.msra.mxu0 0
        %1038 = vmatprep.subr.bf16.mxu0 0
        %1039 = vmatpush1.bf16.msra.mxu0 0
        %1040 = vmatprep.subr.bf16.mxu0 0
        %1041 = vmatpush1.bf16.msra.mxu0 0
        %1042 = vmatprep.subr.bf16.mxu0 0
        %1043 = vmatpush1.bf16.msra.mxu0 0
        %1044 = vmatprep.subr.bf16.mxu0 0
        %1045 = vmatpush1.bf16.msra.mxu0 0
        %1046 = vmatprep.subr.bf16.mxu0 0
        %1047 = vmatpush1.bf16.msra.mxu0 0
        %1048 = vmatprep.subr.bf16.mxu0 0
        %1049 = vmatpush1.bf16.msra.mxu0 %v1032
        %1050 = vmatprep.subr.bf16.mxu0 0
        %1051 = vmatpush2.bf16.msra.mxu0 0
        %1052 = vmatprep.subr.bf16.mxu0 0
        %1053 = vmatpush2.bf16.msra.mxu0 0
        %1054 = vmatprep.subr.bf16.mxu0 0
        %1055 = vmatpush2.bf16.msra.mxu0 0
        %1056 = vmatprep.subr.bf16.mxu0 0
        %1057 = vmatpush2.bf16.msra.mxu0 0
        %1058 = vmatprep.subr.bf16.mxu0 0
        %1059 = vmatpush2.bf16.msra.mxu0 0
        %1060 = vmatprep.subr.bf16.mxu0 0
        %1061 = vmatpush2.bf16.msra.mxu0 0
        %1062 = vmatprep.subr.bf16.mxu0 0
        %1063 = vmatpush2.bf16.msra.mxu0 0
        %1064 = vmatprep.subr.bf16.mxu0 0
        %1065 = vmatpush2.bf16.msra.mxu0 0
        %1066 = vmatprep.mubr.bf16.mxu0 0
        %1067 = vmatmul.mubr.bf16.gmra.mxu0 %v984
        %v1068 = vpop.f32.mrf.mxu0
        %v1069 = vadd.f32 %v777, %v1068
        %v1070 = vpop.f32.mrf.mxu0
        %v1071 = vpop.f32.mrf.mxu0
        %v1072 = vadd.f32 %v780, %v1071
        %v1073 = vpop.f32.mrf.mxu0
        %1074 = vmatprep.mubr.bf16.mxu0 0
        %1075 = vmatmul.mubr.bf16.gmra.mxu0 %v987
        %v1076 = vpop.f32.mrf.mxu0
        %v1077 = vadd.f32 %v785, %v1076
        %v1078 = vpop.f32.mrf.mxu0
        %v1079 = vpop.f32.mrf.mxu0
        %v1080 = vadd.f32 %v788, %v1079
        %v1081 = vpop.f32.mrf.mxu0
        %1082 = vmatprep.mubr.bf16.mxu0 0
        %1083 = vmatmul.mubr.bf16.gmra.mxu0 %v990
        %v1084 = vpop.f32.mrf.mxu0
        %v1085 = vadd.f32 %v793, %v1084
        %v1086 = vpop.f32.mrf.mxu0
        %v1087 = vpop.f32.mrf.mxu0
        %v1088 = vadd.f32 %v796, %v1087
        %v1089 = vpop.f32.mrf.mxu0
        %1090 = vmatprep.mubr.bf16.mxu0 0
        %1091 = vmatmul.mubr.bf16.gmra.mxu0 %v993
        %v1092 = vpop.f32.mrf.mxu0
        %v1093 = vadd.f32 %v801, %v1092
        %v1094 = vpop.f32.mrf.mxu0
        %v1095 = vpop.f32.mrf.mxu0
        %v1096 = vadd.f32 %v804, %v1095
        %v1097 = vpop.f32.mrf.mxu0
        %1098 = vmatprep.mubr.bf16.mxu0 0
        %1099 = vmatmul.mubr.bf16.gmra.mxu0 %v996
        %v1100 = vpop.f32.mrf.mxu0
        %v1101 = vadd.f32 %v809, %v1100
        %v1102 = vpop.f32.mrf.mxu0
        %v1103 = vpop.f32.mrf.mxu0
        %v1104 = vadd.f32 %v812, %v1103
        %v1105 = vpop.f32.mrf.mxu0
        %1106 = vmatprep.mubr.bf16.mxu0 0
        %1107 = vmatmul.mubr.bf16.gmra.mxu0 %v999
        %v1108 = vpop.f32.mrf.mxu0
        %v1109 = vadd.f32 %v817, %v1108
        %v1110 = vpop.f32.mrf.mxu0
        %v1111 = vpop.f32.mrf.mxu0
        %v1112 = vadd.f32 %v820, %v1111
        %v1113 = vpop.f32.mrf.mxu0
        %1114 = vmatprep.mubr.bf16.mxu0 0
        %1115 = vmatmul.mubr.bf16.gmra.mxu0 %v1002
        %v1116 = vpop.f32.mrf.mxu0
        %v1117 = vadd.f32 %v825, %v1116
        %v1118 = vpop.f32.mrf.mxu0
        %v1119 = vpop.f32.mrf.mxu0
        %v1120 = vadd.f32 %v828, %v1119
        %v1121 = vpop.f32.mrf.mxu0
        %1122 = vmatprep.mubr.bf16.mxu0 0
        %1123 = vmatmul.mubr.bf16.gmra.mxu0 %v1005
        %v1124 = vpop.f32.mrf.mxu0
        %v1125 = vadd.f32 %v833, %v1124
        %v1126 = vpop.f32.mrf.mxu0
        %v1127 = vpop.f32.mrf.mxu0
        %v1128 = vadd.f32 %v836, %v1127
        %v1129 = vpop.f32.mrf.mxu0
        %1130 = vmatprep.mubr.bf16.mxu0 0
        %1131 = vmatmul.mubr.bf16.gmra.mxu0 %v1008
        %v1132 = vpop.f32.mrf.mxu0
        %v1133 = vadd.f32 %v841, %v1132
        %v1134 = vpop.f32.mrf.mxu0
        %v1135 = vpop.f32.mrf.mxu0
        %v1136 = vadd.f32 %v844, %v1135
        %v1137 = vpop.f32.mrf.mxu0
        %1138 = vmatprep.mubr.bf16.mxu0 0
        %1139 = vmatmul.mubr.bf16.gmra.mxu0 %v1011
        %v1140 = vpop.f32.mrf.mxu0
        %v1141 = vadd.f32 %v849, %v1140
        %v1142 = vpop.f32.mrf.mxu0
        %v1143 = vpop.f32.mrf.mxu0
        %v1144 = vadd.f32 %v852, %v1143
        %v1145 = vpop.f32.mrf.mxu0
        %1146 = vmatprep.mubr.bf16.mxu0 0
        %1147 = vmatmul.mubr.bf16.gmra.mxu0 %v1014
        %v1148 = vpop.f32.mrf.mxu0
        %v1149 = vadd.f32 %v857, %v1148
        %v1150 = vpop.f32.mrf.mxu0
        %v1151 = vpop.f32.mrf.mxu0
        %v1152 = vadd.f32 %v860, %v1151
        %v1153 = vpop.f32.mrf.mxu0
        %1154 = vmatprep.mubr.bf16.mxu0 0
        %1155 = vmatmul.mubr.bf16.gmra.mxu0 %v1017
        %v1156 = vpop.f32.mrf.mxu0
        %v1157 = vadd.f32 %v865, %v1156
        %v1158 = vpop.f32.mrf.mxu0
        %v1159 = vpop.f32.mrf.mxu0
        %v1160 = vadd.f32 %v868, %v1159
        %v1161 = vpop.f32.mrf.mxu0
        %1162 = vmatprep.mubr.bf16.mxu0 0
        %1163 = vmatmul.mubr.bf16.gmra.mxu0 %v1020
        %v1164 = vpop.f32.mrf.mxu0
        %v1165 = vadd.f32 %v873, %v1164
        %v1166 = vpop.f32.mrf.mxu0
        %v1167 = vpop.f32.mrf.mxu0
        %v1168 = vadd.f32 %v876, %v1167
        %v1169 = vpop.f32.mrf.mxu0
        %1170 = vmatprep.mubr.bf16.mxu0 0
        %1171 = vmatmul.mubr.bf16.gmra.mxu0 %v1023
        %v1172 = vpop.f32.mrf.mxu0
        %v1173 = vadd.f32 %v881, %v1172
        %v1174 = vpop.f32.mrf.mxu0
        %v1175 = vpop.f32.mrf.mxu0
        %v1176 = vadd.f32 %v884, %v1175
        %v1177 = vpop.f32.mrf.mxu0
        %1178 = vmatprep.mubr.bf16.mxu0 0
        %1179 = vmatmul.mubr.bf16.gmra.mxu0 %v1026
        %v1180 = vpop.f32.mrf.mxu0
        %v1181 = vadd.f32 %v889, %v1180
        %v1182 = vpop.f32.mrf.mxu0
        %v1183 = vpop.f32.mrf.mxu0
        %v1184 = vadd.f32 %v892, %v1183
        %v1185 = vpop.f32.mrf.mxu0
        %1186 = vmatprep.mubr.bf16.mxu0 0
        %1187 = vmatmul.mubr.bf16.gmra.mxu0 %v1029
        %v1188 = vpop.f32.mrf.mxu0
        %v1189 = vadd.f32 %v897, %v1188
        %v1190 = vpop.f32.mrf.mxu0
        %v1191 = vpop.f32.mrf.mxu0
        %v1192 = vadd.f32 %v900, %v1191
        %v1193 = vpop.f32.mrf.mxu0
        %1194 = vdwg.mxu0
        %vm1211 = vcmask 1042432
        %vm1212 = vcmask 1046532
        %vm1213 = vmor %vm1211, %vm1212
        %v1214 = vrot.slane %v197, 5
        %v1215 = vrot.slane %v1214, 4
        %v1216 = vrot.slane %v198, 5
        %v1217 = vsel %vm1213, %v1215, %v1216
        %v1218 = vrot.slane %v1216, 4
        %v1219 = vrot.slane %v199, 5
        %v1220 = vsel %vm1213, %v1218, %v1219
        %v1221 = vrot.slane %v200, 5
        %v1222 = vrot.slane %v1221, 4
        %v1223 = vrot.slane %v201, 5
        %v1224 = vsel %vm1213, %v1222, %v1223
        %v1225 = vrot.slane %v1223, 4
        %v1226 = vrot.slane %v202, 5
        %v1227 = vsel %vm1213, %v1225, %v1226
        %v1228 = vrot.slane %v203, 5
        %v1229 = vrot.slane %v1228, 4
        %v1230 = vrot.slane %v204, 5
        %v1231 = vsel %vm1213, %v1229, %v1230
        %v1232 = vrot.slane %v1230, 4
        %v1233 = vrot.slane %v205, 5
        %v1234 = vsel %vm1213, %v1232, %v1233
        %v1235 = vrot.slane %v206, 5
        %v1236 = vrot.slane %v1235, 4
        %v1237 = vrot.slane %v207, 5
        %v1238 = vsel %vm1213, %v1236, %v1237
        %v1239 = vrot.slane %v1237, 4
        %v1240 = vrot.slane %v208, 5
        %v1241 = vsel %vm1213, %v1239, %v1240
        %v1242 = vrot.slane %v209, 5
        %v1243 = vrot.slane %v1242, 4
        %v1244 = vrot.slane %v210, 5
        %v1245 = vsel %vm1213, %v1243, %v1244
        %v1246 = vrot.slane %v1244, 4
        %v1247 = vrot.slane %v211, 5
        %v1248 = vsel %vm1213, %v1246, %v1247
        %v1249 = vrot.slane %v212, 5
        %v1250 = vrot.slane %v1249, 4
        %v1251 = vrot.slane %v213, 5
        %v1252 = vsel %vm1213, %v1250, %v1251
        %v1253 = vrot.slane %v1251, 4
        %v1254 = vrot.slane %v214, 5
        %v1255 = vsel %vm1213, %v1253, %v1254
        %v1256 = vrot.slane %v215, 5
        %v1257 = vrot.slane %v1256, 4
        %v1258 = vrot.slane %v216, 5
        %v1259 = vsel %vm1213, %v1257, %v1258
        %v1260 = vrot.slane %v1258, 4
        %v1261 = vrot.slane %v217, 5
        %v1262 = vsel %vm1213, %v1260, %v1261
        %v1263 = vrot.slane %v218, 5
        %v1264 = vrot.slane %v1263, 4
        %v1265 = vrot.slane %v219, 5
        %v1266 = vsel %vm1213, %v1264, %v1265
        %v1267 = vrot.slane %v1265, 4
        %v1268 = vrot.slane %v220, 5
        %v1269 = vsel %vm1213, %v1267, %v1268
        %v1270 = vrot.slane %v221, 5
        %v1271 = vrot.slane %v1270, 4
        %v1272 = vrot.slane %v222, 5
        %v1273 = vsel %vm1213, %v1271, %v1272
        %v1274 = vrot.slane %v1272, 4
        %v1275 = vrot.slane %v223, 5
        %v1276 = vsel %vm1213, %v1274, %v1275
        %v1277 = vrot.slane %v224, 5
        %v1278 = vrot.slane %v1277, 4
        %v1279 = vrot.slane %v225, 5
        %v1280 = vsel %vm1213, %v1278, %v1279
        %v1281 = vrot.slane %v1279, 4
        %v1282 = vrot.slane %v226, 5
        %v1283 = vsel %vm1213, %v1281, %v1282
        %v1284 = vrot.slane %v227, 5
        %v1285 = vrot.slane %v1284, 4
        %v1286 = vrot.slane %v228, 5
        %v1287 = vsel %vm1213, %v1285, %v1286
        %v1288 = vrot.slane %v1286, 4
        %v1289 = vrot.slane %v229, 5
        %v1290 = vsel %vm1213, %v1288, %v1289
        %v1291 = vrot.slane %v230, 5
        %v1292 = vrot.slane %v1291, 4
        %v1293 = vrot.slane %v231, 5
        %v1294 = vsel %vm1213, %v1292, %v1293
        %v1295 = vrot.slane %v1293, 4
        %v1296 = vrot.slane %v232, 5
        %v1297 = vsel %vm1213, %v1295, %v1296
        %v1298 = vrot.slane %v233, 5
        %v1299 = vrot.slane %v1298, 4
        %v1300 = vrot.slane %v234, 5
        %v1301 = vsel %vm1213, %v1299, %v1300
        %v1302 = vrot.slane %v1300, 4
        %v1303 = vrot.slane %v235, 5
        %v1304 = vsel %vm1213, %v1302, %v1303
        %v1305 = vrot.slane %v236, 5
        %v1306 = vrot.slane %v1305, 4
        %v1307 = vrot.slane %v237, 5
        %v1308 = vsel %vm1213, %v1306, %v1307
        %v1309 = vrot.slane %v1307, 4
        %v1310 = vrot.slane %v238, 5
        %v1311 = vsel %vm1213, %v1309, %v1310
        %v1312 = vrot.slane %v239, 5
        %v1313 = vrot.slane %v1312, 4
        %v1314 = vrot.slane %v240, 5
        %v1315 = vsel %vm1213, %v1313, %v1314
        %v1316 = vrot.slane %v1314, 4
        %v1317 = vrot.slane %v241, 5
        %v1318 = vsel %vm1213, %v1316, %v1317
        %v1319 = vrot.slane %v242, 5
        %v1320 = vrot.slane %v1319, 4
        %v1321 = vrot.slane %v243, 5
        %v1322 = vsel %vm1213, %v1320, %v1321
        %v1323 = vrot.slane %v1321, 4
        %v1324 = vrot.slane %v244, 5
        %v1325 = vsel %vm1213, %v1323, %v1324
        %s1326 = scalar_lea.vmem %s1, 4
        %v1327 = vld [vmem:[%s1326] sm:$0x3]
        %v1328 = vunpack.c.l.b16 %v1217
        %v1329 = vunpack.c.l.b16 %v1220
        %v1330 = vunpack.c.l.b16 %v1224
        %v1331 = vunpack.c.l.b16 %v1227
        %v1332 = vunpack.c.l.b16 %v1231
        %v1333 = vunpack.c.l.b16 %v1234
        %v1334 = vunpack.c.l.b16 %v1238
        %v1335 = vunpack.c.l.b16 %v1241
        %v1336 = vunpack.c.l.b16 %v1245
        %v1337 = vunpack.c.l.b16 %v1248
        %v1338 = vunpack.c.l.b16 %v1252
        %v1339 = vunpack.c.l.b16 %v1255
        %v1340 = vunpack.c.l.b16 %v1259
        %v1341 = vunpack.c.l.b16 %v1262
        %v1342 = vunpack.c.l.b16 %v1266
        %v1343 = vunpack.c.l.b16 %v1269
        %v1344 = vunpack.c.l.b16 %v1273
        %v1345 = vunpack.c.l.b16 %v1276
        %v1346 = vunpack.c.l.b16 %v1280
        %v1347 = vunpack.c.l.b16 %v1283
        %v1348 = vunpack.c.l.b16 %v1287
        %v1349 = vunpack.c.l.b16 %v1290
        %v1350 = vunpack.c.l.b16 %v1294
        %v1351 = vunpack.c.l.b16 %v1297
        %v1352 = vunpack.c.l.b16 %v1301
        %v1353 = vunpack.c.l.b16 %v1304
        %v1354 = vunpack.c.l.b16 %v1308
        %v1355 = vunpack.c.l.b16 %v1311
        %v1356 = vunpack.c.l.b16 %v1315
        %v1357 = vunpack.c.l.b16 %v1318
        %v1358 = vunpack.c.l.b16 %v1322
        %v1359 = vunpack.c.l.b16 %v1325
        %v1360 = vpack.c.b16 %v1329, %v1328
        %v1361 = vpack.c.b16 %v1331, %v1330
        %v1362 = vpack.c.b16 %v1333, %v1332
        %v1363 = vpack.c.b16 %v1335, %v1334
        %v1364 = vpack.c.b16 %v1337, %v1336
        %v1365 = vpack.c.b16 %v1339, %v1338
        %v1366 = vpack.c.b16 %v1341, %v1340
        %v1367 = vpack.c.b16 %v1343, %v1342
        %v1368 = vpack.c.b16 %v1345, %v1344
        %v1369 = vpack.c.b16 %v1347, %v1346
        %v1370 = vpack.c.b16 %v1349, %v1348
        %v1371 = vpack.c.b16 %v1351, %v1350
        %v1372 = vpack.c.b16 %v1353, %v1352
        %v1373 = vpack.c.b16 %v1355, %v1354
        %v1374 = vpack.c.b16 %v1357, %v1356
        %v1375 = vpack.c.b16 %v1359, %v1358
        %v1377 = vsel %vm689, %v1360, 0
        %v1380 = vsel %vm689, %v1361, 0
        %v1383 = vsel %vm689, %v1362, 0
        %v1386 = vsel %vm689, %v1363, 0
        %v1389 = vsel %vm689, %v1364, 0
        %v1392 = vsel %vm689, %v1365, 0
        %v1395 = vsel %vm689, %v1366, 0
        %v1398 = vsel %vm689, %v1367, 0
        %v1401 = vsel %vm689, %v1368, 0
        %v1404 = vsel %vm689, %v1369, 0
        %v1407 = vsel %vm689, %v1370, 0
        %v1410 = vsel %vm689, %v1371, 0
        %v1413 = vsel %vm689, %v1372, 0
        %v1416 = vsel %vm689, %v1373, 0
        %v1419 = vsel %vm689, %v1374, 0
        %v1422 = vsel %vm689, %v1375, 0
        %v1425 = vsel %vm738, %v1327, 0
        %1427 = vmatprep.subr.bf16.mxu0 0
        %1428 = vmatpush1.bf16.msra.mxu0 0
        %1429 = vmatprep.subr.bf16.mxu0 0
        %1430 = vmatpush1.bf16.msra.mxu0 0
        %1431 = vmatprep.subr.bf16.mxu0 0
        %1432 = vmatpush1.bf16.msra.mxu0 0
        %1433 = vmatprep.subr.bf16.mxu0 0
        %1434 = vmatpush1.bf16.msra.mxu0 0
        %1435 = vmatprep.subr.bf16.mxu0 0
        %1436 = vmatpush1.bf16.msra.mxu0 0
        %1437 = vmatprep.subr.bf16.mxu0 0
        %1438 = vmatpush1.bf16.msra.mxu0 0
        %1439 = vmatprep.subr.bf16.mxu0 0
        %1440 = vmatpush1.bf16.msra.mxu0 0
        %1441 = vmatprep.subr.bf16.mxu0 0
        %1442 = vmatpush1.bf16.msra.mxu0 %v1425
        %1443 = vmatprep.subr.bf16.mxu0 0
        %1444 = vmatpush2.bf16.msra.mxu0 0
        %1445 = vmatprep.subr.bf16.mxu0 0
        %1446 = vmatpush2.bf16.msra.mxu0 0
        %1447 = vmatprep.subr.bf16.mxu0 0
        %1448 = vmatpush2.bf16.msra.mxu0 0
        %1449 = vmatprep.subr.bf16.mxu0 0
        %1450 = vmatpush2.bf16.msra.mxu0 0
        %1451 = vmatprep.subr.bf16.mxu0 0
        %1452 = vmatpush2.bf16.msra.mxu0 0
        %1453 = vmatprep.subr.bf16.mxu0 0
        %1454 = vmatpush2.bf16.msra.mxu0 0
        %1455 = vmatprep.subr.bf16.mxu0 0
        %1456 = vmatpush2.bf16.msra.mxu0 0
        %1457 = vmatprep.subr.bf16.mxu0 0
        %1458 = vmatpush2.bf16.msra.mxu0 0
        %1459 = vmatprep.mubr.bf16.mxu0 0
        %1460 = vmatmul.mubr.bf16.gmra.mxu0 %v1377
        %v1461 = vpop.f32.mrf.mxu0
        %v1462 = vadd.f32 0.0, %v1461
        %v1463 = vpop.f32.mrf.mxu0
        %v1464 = vpop.f32.mrf.mxu0
        %v1465 = vadd.f32 0.0, %v1464
        %v1466 = vpop.f32.mrf.mxu0
        %1467 = vmatprep.mubr.bf16.mxu0 0
        %1468 = vmatmul.mubr.bf16.gmra.mxu0 %v1380
        %v1469 = vpop.f32.mrf.mxu0
        %v1470 = vadd.f32 0.0, %v1469
        %v1471 = vpop.f32.mrf.mxu0
        %v1472 = vpop.f32.mrf.mxu0
        %v1473 = vadd.f32 0.0, %v1472
        %v1474 = vpop.f32.mrf.mxu0
        %1475 = vmatprep.mubr.bf16.mxu0 0
        %1476 = vmatmul.mubr.bf16.gmra.mxu0 %v1383
        %v1477 = vpop.f32.mrf.mxu0
        %v1478 = vadd.f32 0.0, %v1477
        %v1479 = vpop.f32.mrf.mxu0
        %v1480 = vpop.f32.mrf.mxu0
        %v1481 = vadd.f32 0.0, %v1480
        %v1482 = vpop.f32.mrf.mxu0
        %1483 = vmatprep.mubr.bf16.mxu0 0
        %1484 = vmatmul.mubr.bf16.gmra.mxu0 %v1386
        %v1485 = vpop.f32.mrf.mxu0
        %v1486 = vadd.f32 0.0, %v1485
        %v1487 = vpop.f32.mrf.mxu0
        %v1488 = vpop.f32.mrf.mxu0
        %v1489 = vadd.f32 0.0, %v1488
        %v1490 = vpop.f32.mrf.mxu0
        %1491 = vmatprep.mubr.bf16.mxu0 0
        %1492 = vmatmul.mubr.bf16.gmra.mxu0 %v1389
        %v1493 = vpop.f32.mrf.mxu0
        %v1494 = vadd.f32 0.0, %v1493
        %v1495 = vpop.f32.mrf.mxu0
        %v1496 = vpop.f32.mrf.mxu0
        %v1497 = vadd.f32 0.0, %v1496
        %v1498 = vpop.f32.mrf.mxu0
        %1499 = vmatprep.mubr.bf16.mxu0 0
        %1500 = vmatmul.mubr.bf16.gmra.mxu0 %v1392
        %v1501 = vpop.f32.mrf.mxu0
        %v1502 = vadd.f32 0.0, %v1501
        %v1503 = vpop.f32.mrf.mxu0
        %v1504 = vpop.f32.mrf.mxu0
        %v1505 = vadd.f32 0.0, %v1504
        %v1506 = vpop.f32.mrf.mxu0
        %1507 = vmatprep.mubr.bf16.mxu0 0
        %1508 = vmatmul.mubr.bf16.gmra.mxu0 %v1395
        %v1509 = vpop.f32.mrf.mxu0
        %v1510 = vadd.f32 0.0, %v1509
        %v1511 = vpop.f32.mrf.mxu0
        %v1512 = vpop.f32.mrf.mxu0
        %v1513 = vadd.f32 0.0, %v1512
        %v1514 = vpop.f32.mrf.mxu0
        %1515 = vmatprep.mubr.bf16.mxu0 0
        %1516 = vmatmul.mubr.bf16.gmra.mxu0 %v1398
        %v1517 = vpop.f32.mrf.mxu0
        %v1518 = vadd.f32 0.0, %v1517
        %v1519 = vpop.f32.mrf.mxu0
        %v1520 = vpop.f32.mrf.mxu0
        %v1521 = vadd.f32 0.0, %v1520
        %v1522 = vpop.f32.mrf.mxu0
        %1523 = vmatprep.mubr.bf16.mxu0 0
        %1524 = vmatmul.mubr.bf16.gmra.mxu0 %v1401
        %v1525 = vpop.f32.mrf.mxu0
        %v1526 = vadd.f32 0.0, %v1525
        %v1527 = vpop.f32.mrf.mxu0
        %v1528 = vpop.f32.mrf.mxu0
        %v1529 = vadd.f32 0.0, %v1528
        %v1530 = vpop.f32.mrf.mxu0
        %1531 = vmatprep.mubr.bf16.mxu0 0
        %1532 = vmatmul.mubr.bf16.gmra.mxu0 %v1404
        %v1533 = vpop.f32.mrf.mxu0
        %v1534 = vadd.f32 0.0, %v1533
        %v1535 = vpop.f32.mrf.mxu0
        %v1536 = vpop.f32.mrf.mxu0
        %v1537 = vadd.f32 0.0, %v1536
        %v1538 = vpop.f32.mrf.mxu0
        %1539 = vmatprep.mubr.bf16.mxu0 0
        %1540 = vmatmul.mubr.bf16.gmra.mxu0 %v1407
        %v1541 = vpop.f32.mrf.mxu0
        %v1542 = vadd.f32 0.0, %v1541
        %v1543 = vpop.f32.mrf.mxu0
        %v1544 = vpop.f32.mrf.mxu0
        %v1545 = vadd.f32 0.0, %v1544
        %v1546 = vpop.f32.mrf.mxu0
        %1547 = vmatprep.mubr.bf16.mxu0 0
        %1548 = vmatmul.mubr.bf16.gmra.mxu0 %v1410
        %v1549 = vpop.f32.mrf.mxu0
        %v1550 = vadd.f32 0.0, %v1549
        %v1551 = vpop.f32.mrf.mxu0
        %v1552 = vpop.f32.mrf.mxu0
        %v1553 = vadd.f32 0.0, %v1552
        %v1554 = vpop.f32.mrf.mxu0
        %1555 = vmatprep.mubr.bf16.mxu0 0
        %1556 = vmatmul.mubr.bf16.gmra.mxu0 %v1413
        %v1557 = vpop.f32.mrf.mxu0
        %v1558 = vadd.f32 0.0, %v1557
        %v1559 = vpop.f32.mrf.mxu0
        %v1560 = vpop.f32.mrf.mxu0
        %v1561 = vadd.f32 0.0, %v1560
        %v1562 = vpop.f32.mrf.mxu0
        %1563 = vmatprep.mubr.bf16.mxu0 0
        %1564 = vmatmul.mubr.bf16.gmra.mxu0 %v1416
        %v1565 = vpop.f32.mrf.mxu0
        %v1566 = vadd.f32 0.0, %v1565
        %v1567 = vpop.f32.mrf.mxu0
        %v1568 = vpop.f32.mrf.mxu0
        %v1569 = vadd.f32 0.0, %v1568
        %v1570 = vpop.f32.mrf.mxu0
        %1571 = vmatprep.mubr.bf16.mxu0 0
        %1572 = vmatmul.mubr.bf16.gmra.mxu0 %v1419
        %v1573 = vpop.f32.mrf.mxu0
        %v1574 = vadd.f32 0.0, %v1573
        %v1575 = vpop.f32.mrf.mxu0
        %v1576 = vpop.f32.mrf.mxu0
        %v1577 = vadd.f32 0.0, %v1576
        %v1578 = vpop.f32.mrf.mxu0
        %1579 = vmatprep.mubr.bf16.mxu0 0
        %1580 = vmatmul.mubr.bf16.gmra.mxu0 %v1422
        %v1581 = vpop.f32.mrf.mxu0
        %v1582 = vadd.f32 0.0, %v1581
        %v1583 = vpop.f32.mrf.mxu0
        %v1584 = vpop.f32.mrf.mxu0
        %v1585 = vadd.f32 0.0, %v1584
        %v1586 = vpop.f32.mrf.mxu0
        %1587 = vdwg.mxu0
        %v1588 = vadd.f32 %v1069, %v1462
        %v1589 = vadd.f32 %v1072, %v1465
        %v1590 = vadd.f32 %v1077, %v1470
        %v1591 = vadd.f32 %v1080, %v1473
        %v1592 = vadd.f32 %v1085, %v1478
        %v1593 = vadd.f32 %v1088, %v1481
        %v1594 = vadd.f32 %v1093, %v1486
        %v1595 = vadd.f32 %v1096, %v1489
        %v1596 = vadd.f32 %v1101, %v1494
        %v1597 = vadd.f32 %v1104, %v1497
        %v1598 = vadd.f32 %v1109, %v1502
        %v1599 = vadd.f32 %v1112, %v1505
        %v1600 = vadd.f32 %v1117, %v1510
        %v1601 = vadd.f32 %v1120, %v1513
        %v1602 = vadd.f32 %v1125, %v1518
        %v1603 = vadd.f32 %v1128, %v1521
        %v1604 = vadd.f32 %v1133, %v1526
        %v1605 = vadd.f32 %v1136, %v1529
        %v1606 = vadd.f32 %v1141, %v1534
        %v1607 = vadd.f32 %v1144, %v1537
        %v1608 = vadd.f32 %v1149, %v1542
        %v1609 = vadd.f32 %v1152, %v1545
        %v1610 = vadd.f32 %v1157, %v1550
        %v1611 = vadd.f32 %v1160, %v1553
        %v1612 = vadd.f32 %v1165, %v1558
        %v1613 = vadd.f32 %v1168, %v1561
        %v1614 = vadd.f32 %v1173, %v1566
        %v1615 = vadd.f32 %v1176, %v1569
        %v1616 = vadd.f32 %v1181, %v1574
        %v1617 = vadd.f32 %v1184, %v1577
        %v1618 = vadd.f32 %v1189, %v1582
        %v1619 = vadd.f32 %v1192, %v1585
        %s1620 = scalar_lea.vmem %s1, 6
        %v1621 = vld [vmem:[%s1620] sm:$0x3]
        %v1624 = vunpack.c.l.b16 %v245
        %v1625 = vunpack.c.l.b16 %v246
        %v1626 = vpack.c.b16 %v1625, %v1624
        %v1628 = vsel %vm689, %v1626, 0
        %v1631 = vsel %vm738, %v1621, 0
        %1633 = vmatprep.subr.bf16.mxu0 0
        %1634 = vmatpush1.bf16.msra.mxu0 0
        %1635 = vmatprep.subr.bf16.mxu0 0
        %1636 = vmatpush1.bf16.msra.mxu0 0
        %1637 = vmatprep.subr.bf16.mxu0 0
        %1638 = vmatpush1.bf16.msra.mxu0 0
        %1639 = vmatprep.subr.bf16.mxu0 0
        %1640 = vmatpush1.bf16.msra.mxu0 0
        %1641 = vmatprep.subr.bf16.mxu0 0
        %1642 = vmatpush1.bf16.msra.mxu0 0
        %1643 = vmatprep.subr.bf16.mxu0 0
        %1644 = vmatpush1.bf16.msra.mxu0 0
        %1645 = vmatprep.subr.bf16.mxu0 0
        %1646 = vmatpush1.bf16.msra.mxu0 0
        %1647 = vmatprep.subr.bf16.mxu0 0
        %1648 = vmatpush1.bf16.msra.mxu0 %v1631
        %1649 = vmatprep.subr.bf16.mxu0 0
        %1650 = vmatpush2.bf16.msra.mxu0 0
        %1651 = vmatprep.subr.bf16.mxu0 0
        %1652 = vmatpush2.bf16.msra.mxu0 0
        %1653 = vmatprep.subr.bf16.mxu0 0
        %1654 = vmatpush2.bf16.msra.mxu0 0
        %1655 = vmatprep.subr.bf16.mxu0 0
        %1656 = vmatpush2.bf16.msra.mxu0 0
        %1657 = vmatprep.subr.bf16.mxu0 0
        %1658 = vmatpush2.bf16.msra.mxu0 0
        %1659 = vmatprep.subr.bf16.mxu0 0
        %1660 = vmatpush2.bf16.msra.mxu0 0
        %1661 = vmatprep.subr.bf16.mxu0 0
        %1662 = vmatpush2.bf16.msra.mxu0 0
        %1663 = vmatprep.subr.bf16.mxu0 0
        %1664 = vmatpush2.bf16.msra.mxu0 0
        %1665 = vmatprep.mubr.bf16.mxu0 0
        %1666 = vmatmul.mubr.bf16.gmra.mxu0 %v987
        %v1667 = vpop.f32.mrf.mxu0
        %v1668 = vadd.f32 0.0, %v1667
        %v1669 = vpop.f32.mrf.mxu0
        %v1670 = vpop.f32.mrf.mxu0
        %v1671 = vadd.f32 0.0, %v1670
        %v1672 = vpop.f32.mrf.mxu0
        %1673 = vmatprep.mubr.bf16.mxu0 0
        %1674 = vmatmul.mubr.bf16.gmra.mxu0 %v990
        %v1675 = vpop.f32.mrf.mxu0
        %v1676 = vadd.f32 0.0, %v1675
        %v1677 = vpop.f32.mrf.mxu0
        %v1678 = vpop.f32.mrf.mxu0
        %v1679 = vadd.f32 0.0, %v1678
        %v1680 = vpop.f32.mrf.mxu0
        %1681 = vmatprep.mubr.bf16.mxu0 0
        %1682 = vmatmul.mubr.bf16.gmra.mxu0 %v993
        %v1683 = vpop.f32.mrf.mxu0
        %v1684 = vadd.f32 0.0, %v1683
        %v1685 = vpop.f32.mrf.mxu0
        %v1686 = vpop.f32.mrf.mxu0
        %v1687 = vadd.f32 0.0, %v1686
        %v1688 = vpop.f32.mrf.mxu0
        %1689 = vmatprep.mubr.bf16.mxu0 0
        %1690 = vmatmul.mubr.bf16.gmra.mxu0 %v996
        %v1691 = vpop.f32.mrf.mxu0
        %v1692 = vadd.f32 0.0, %v1691
        %v1693 = vpop.f32.mrf.mxu0
        %v1694 = vpop.f32.mrf.mxu0
        %v1695 = vadd.f32 0.0, %v1694
        %v1696 = vpop.f32.mrf.mxu0
        %1697 = vmatprep.mubr.bf16.mxu0 0
        %1698 = vmatmul.mubr.bf16.gmra.mxu0 %v999
        %v1699 = vpop.f32.mrf.mxu0
        %v1700 = vadd.f32 0.0, %v1699
        %v1701 = vpop.f32.mrf.mxu0
        %v1702 = vpop.f32.mrf.mxu0
        %v1703 = vadd.f32 0.0, %v1702
        %v1704 = vpop.f32.mrf.mxu0
        %1705 = vmatprep.mubr.bf16.mxu0 0
        %1706 = vmatmul.mubr.bf16.gmra.mxu0 %v1002
        %v1707 = vpop.f32.mrf.mxu0
        %v1708 = vadd.f32 0.0, %v1707
        %v1709 = vpop.f32.mrf.mxu0
        %v1710 = vpop.f32.mrf.mxu0
        %v1711 = vadd.f32 0.0, %v1710
        %v1712 = vpop.f32.mrf.mxu0
        %1713 = vmatprep.mubr.bf16.mxu0 0
        %1714 = vmatmul.mubr.bf16.gmra.mxu0 %v1005
        %v1715 = vpop.f32.mrf.mxu0
        %v1716 = vadd.f32 0.0, %v1715
        %v1717 = vpop.f32.mrf.mxu0
        %v1718 = vpop.f32.mrf.mxu0
        %v1719 = vadd.f32 0.0, %v1718
        %v1720 = vpop.f32.mrf.mxu0
        %1721 = vmatprep.mubr.bf16.mxu0 0
        %1722 = vmatmul.mubr.bf16.gmra.mxu0 %v1008
        %v1723 = vpop.f32.mrf.mxu0
        %v1724 = vadd.f32 0.0, %v1723
        %v1725 = vpop.f32.mrf.mxu0
        %v1726 = vpop.f32.mrf.mxu0
        %v1727 = vadd.f32 0.0, %v1726
        %v1728 = vpop.f32.mrf.mxu0
        %1729 = vmatprep.mubr.bf16.mxu0 0
        %1730 = vmatmul.mubr.bf16.gmra.mxu0 %v1011
        %v1731 = vpop.f32.mrf.mxu0
        %v1732 = vadd.f32 0.0, %v1731
        %v1733 = vpop.f32.mrf.mxu0
        %v1734 = vpop.f32.mrf.mxu0
        %v1735 = vadd.f32 0.0, %v1734
        %v1736 = vpop.f32.mrf.mxu0
        %1737 = vmatprep.mubr.bf16.mxu0 0
        %1738 = vmatmul.mubr.bf16.gmra.mxu0 %v1014
        %v1739 = vpop.f32.mrf.mxu0
        %v1740 = vadd.f32 0.0, %v1739
        %v1741 = vpop.f32.mrf.mxu0
        %v1742 = vpop.f32.mrf.mxu0
        %v1743 = vadd.f32 0.0, %v1742
        %v1744 = vpop.f32.mrf.mxu0
        %1745 = vmatprep.mubr.bf16.mxu0 0
        %1746 = vmatmul.mubr.bf16.gmra.mxu0 %v1017
        %v1747 = vpop.f32.mrf.mxu0
        %v1748 = vadd.f32 0.0, %v1747
        %v1749 = vpop.f32.mrf.mxu0
        %v1750 = vpop.f32.mrf.mxu0
        %v1751 = vadd.f32 0.0, %v1750
        %v1752 = vpop.f32.mrf.mxu0
        %1753 = vmatprep.mubr.bf16.mxu0 0
        %1754 = vmatmul.mubr.bf16.gmra.mxu0 %v1020
        %v1755 = vpop.f32.mrf.mxu0
        %v1756 = vadd.f32 0.0, %v1755
        %v1757 = vpop.f32.mrf.mxu0
        %v1758 = vpop.f32.mrf.mxu0
        %v1759 = vadd.f32 0.0, %v1758
        %v1760 = vpop.f32.mrf.mxu0
        %1761 = vmatprep.mubr.bf16.mxu0 0
        %1762 = vmatmul.mubr.bf16.gmra.mxu0 %v1023
        %v1763 = vpop.f32.mrf.mxu0
        %v1764 = vadd.f32 0.0, %v1763
        %v1765 = vpop.f32.mrf.mxu0
        %v1766 = vpop.f32.mrf.mxu0
        %v1767 = vadd.f32 0.0, %v1766
        %v1768 = vpop.f32.mrf.mxu0
        %1769 = vmatprep.mubr.bf16.mxu0 0
        %1770 = vmatmul.mubr.bf16.gmra.mxu0 %v1026
        %v1771 = vpop.f32.mrf.mxu0
        %v1772 = vadd.f32 0.0, %v1771
        %v1773 = vpop.f32.mrf.mxu0
        %v1774 = vpop.f32.mrf.mxu0
        %v1775 = vadd.f32 0.0, %v1774
        %v1776 = vpop.f32.mrf.mxu0
        %1777 = vmatprep.mubr.bf16.mxu0 0
        %1778 = vmatmul.mubr.bf16.gmra.mxu0 %v1029
        %v1779 = vpop.f32.mrf.mxu0
        %v1780 = vadd.f32 0.0, %v1779
        %v1781 = vpop.f32.mrf.mxu0
        %v1782 = vpop.f32.mrf.mxu0
        %v1783 = vadd.f32 0.0, %v1782
        %v1784 = vpop.f32.mrf.mxu0
        %1785 = vmatprep.mubr.bf16.mxu0 0
        %1786 = vmatmul.mubr.bf16.gmra.mxu0 %v1628
        %v1787 = vpop.f32.mrf.mxu0
        %v1788 = vadd.f32 0.0, %v1787
        %v1789 = vpop.f32.mrf.mxu0
        %v1790 = vpop.f32.mrf.mxu0
        %v1791 = vadd.f32 0.0, %v1790
        %v1792 = vpop.f32.mrf.mxu0
        %1793 = vdwg.mxu0
        %v1794 = vadd.f32 %v1588, %v1668
        %v1795 = vadd.f32 %v1589, %v1671
        %v1796 = vadd.f32 %v1590, %v1676
        %v1797 = vadd.f32 %v1591, %v1679
        %v1798 = vadd.f32 %v1592, %v1684
        %v1799 = vadd.f32 %v1593, %v1687
        %v1800 = vadd.f32 %v1594, %v1692
        %v1801 = vadd.f32 %v1595, %v1695
        %v1802 = vadd.f32 %v1596, %v1700
        %v1803 = vadd.f32 %v1597, %v1703
        %v1804 = vadd.f32 %v1598, %v1708
        %v1805 = vadd.f32 %v1599, %v1711
        %v1806 = vadd.f32 %v1600, %v1716
        %v1807 = vadd.f32 %v1601, %v1719
        %v1808 = vadd.f32 %v1602, %v1724
        %v1809 = vadd.f32 %v1603, %v1727
        %v1810 = vadd.f32 %v1604, %v1732
        %v1811 = vadd.f32 %v1605, %v1735
        %v1812 = vadd.f32 %v1606, %v1740
        %v1813 = vadd.f32 %v1607, %v1743
        %v1814 = vadd.f32 %v1608, %v1748
        %v1815 = vadd.f32 %v1609, %v1751
        %v1816 = vadd.f32 %v1610, %v1756
        %v1817 = vadd.f32 %v1611, %v1759
        %v1818 = vadd.f32 %v1612, %v1764
        %v1819 = vadd.f32 %v1613, %v1767
        %v1820 = vadd.f32 %v1614, %v1772
        %v1821 = vadd.f32 %v1615, %v1775
        %v1822 = vadd.f32 %v1616, %v1780
        %v1823 = vadd.f32 %v1617, %v1783
        %v1824 = vadd.f32 %v1618, %v1788
        %v1825 = vadd.f32 %v1619, %v1791
        %v1827 = vshrl.u32 %v245, 16
        %v1829 = vrot.slane %v1827, 4
        %v1830 = vshll.u32 %v245, 16
        %v1832 = vrot.slane %v1830, 5
        %v1833 = vor.u32 %v1829, %v1832
        %v1834 = vrot.slane %v1833, 4
        %v1836 = vshll.u32 %v246, 16
        %v1838 = vrot.slane %v1836, 5
        %v1839 = vsel %vm254, %v1834, %v1838
        %v1840 = vshrl.u32 %v246, 16
        %v1842 = vrot.slane %v1840, 4
        %v1843 = vor.u32 %v1842, %v1838
        %v1844 = vrot.slane %v1843, 4
        %v1846 = vshll.u32 %v247, 16
        %v1848 = vrot.slane %v1846, 5
        %v1849 = vsel %vm254, %v1844, %v1848
        %s1850 = scalar_lea.vmem %s1, 8
        %v1851 = vld [vmem:[%s1850] sm:$0x3]
        %v1852 = vunpack.c.l.b16 %v1839
        %v1853 = vunpack.c.l.b16 %v1849
        %v1854 = vpack.c.b16 %v1853, %v1852
        %v1856 = vsel %vm689, %v1854, 0
        %v1859 = vsel %vm738, %v1851, 0
        %1861 = vmatprep.subr.bf16.mxu0 0
        %1862 = vmatpush1.bf16.msra.mxu0 0
        %1863 = vmatprep.subr.bf16.mxu0 0
        %1864 = vmatpush1.bf16.msra.mxu0 0
        %1865 = vmatprep.subr.bf16.mxu0 0
        %1866 = vmatpush1.bf16.msra.mxu0 0
        %1867 = vmatprep.subr.bf16.mxu0 0
        %1868 = vmatpush1.bf16.msra.mxu0 0
        %1869 = vmatprep.subr.bf16.mxu0 0
        %1870 = vmatpush1.bf16.msra.mxu0 0
        %1871 = vmatprep.subr.bf16.mxu0 0
        %1872 = vmatpush1.bf16.msra.mxu0 0
        %1873 = vmatprep.subr.bf16.mxu0 0
        %1874 = vmatpush1.bf16.msra.mxu0 0
        %1875 = vmatprep.subr.bf16.mxu0 0
        %1876 = vmatpush1.bf16.msra.mxu0 %v1859
        %1877 = vmatprep.subr.bf16.mxu0 0
        %1878 = vmatpush2.bf16.msra.mxu0 0
        %1879 = vmatprep.subr.bf16.mxu0 0
        %1880 = vmatpush2.bf16.msra.mxu0 0
        %1881 = vmatprep.subr.bf16.mxu0 0
        %1882 = vmatpush2.bf16.msra.mxu0 0
        %1883 = vmatprep.subr.bf16.mxu0 0
        %1884 = vmatpush2.bf16.msra.mxu0 0
        %1885 = vmatprep.subr.bf16.mxu0 0
        %1886 = vmatpush2.bf16.msra.mxu0 0
        %1887 = vmatprep.subr.bf16.mxu0 0
        %1888 = vmatpush2.bf16.msra.mxu0 0
        %1889 = vmatprep.subr.bf16.mxu0 0
        %1890 = vmatpush2.bf16.msra.mxu0 0
        %1891 = vmatprep.subr.bf16.mxu0 0
        %1892 = vmatpush2.bf16.msra.mxu0 0
        %1893 = vmatprep.mubr.bf16.mxu0 0
        %1894 = vmatmul.mubr.bf16.gmra.mxu0 %v694
        %v1895 = vpop.f32.mrf.mxu0
        %v1896 = vadd.f32 0.0, %v1895
        %v1897 = vpop.f32.mrf.mxu0
        %v1898 = vpop.f32.mrf.mxu0
        %v1899 = vadd.f32 0.0, %v1898
        %v1900 = vpop.f32.mrf.mxu0
        %1901 = vmatprep.mubr.bf16.mxu0 0
        %1902 = vmatmul.mubr.bf16.gmra.mxu0 %v697
        %v1903 = vpop.f32.mrf.mxu0
        %v1904 = vadd.f32 0.0, %v1903
        %v1905 = vpop.f32.mrf.mxu0
        %v1906 = vpop.f32.mrf.mxu0
        %v1907 = vadd.f32 0.0, %v1906
        %v1908 = vpop.f32.mrf.mxu0
        %1909 = vmatprep.mubr.bf16.mxu0 0
        %1910 = vmatmul.mubr.bf16.gmra.mxu0 %v700
        %v1911 = vpop.f32.mrf.mxu0
        %v1912 = vadd.f32 0.0, %v1911
        %v1913 = vpop.f32.mrf.mxu0
        %v1914 = vpop.f32.mrf.mxu0
        %v1915 = vadd.f32 0.0, %v1914
        %v1916 = vpop.f32.mrf.mxu0
        %1917 = vmatprep.mubr.bf16.mxu0 0
        %1918 = vmatmul.mubr.bf16.gmra.mxu0 %v703
        %v1919 = vpop.f32.mrf.mxu0
        %v1920 = vadd.f32 0.0, %v1919
        %v1921 = vpop.f32.mrf.mxu0
        %v1922 = vpop.f32.mrf.mxu0
        %v1923 = vadd.f32 0.0, %v1922
        %v1924 = vpop.f32.mrf.mxu0
        %1925 = vmatprep.mubr.bf16.mxu0 0
        %1926 = vmatmul.mubr.bf16.gmra.mxu0 %v706
        %v1927 = vpop.f32.mrf.mxu0
        %v1928 = vadd.f32 0.0, %v1927
        %v1929 = vpop.f32.mrf.mxu0
        %v1930 = vpop.f32.mrf.mxu0
        %v1931 = vadd.f32 0.0, %v1930
        %v1932 = vpop.f32.mrf.mxu0
        %1933 = vmatprep.mubr.bf16.mxu0 0
        %1934 = vmatmul.mubr.bf16.gmra.mxu0 %v709
        %v1935 = vpop.f32.mrf.mxu0
        %v1936 = vadd.f32 0.0, %v1935
        %v1937 = vpop.f32.mrf.mxu0
        %v1938 = vpop.f32.mrf.mxu0
        %v1939 = vadd.f32 0.0, %v1938
        %v1940 = vpop.f32.mrf.mxu0
        %1941 = vmatprep.mubr.bf16.mxu0 0
        %1942 = vmatmul.mubr.bf16.gmra.mxu0 %v712
        %v1943 = vpop.f32.mrf.mxu0
        %v1944 = vadd.f32 0.0, %v1943
        %v1945 = vpop.f32.mrf.mxu0
        %v1946 = vpop.f32.mrf.mxu0
        %v1947 = vadd.f32 0.0, %v1946
        %v1948 = vpop.f32.mrf.mxu0
        %1949 = vmatprep.mubr.bf16.mxu0 0
        %1950 = vmatmul.mubr.bf16.gmra.mxu0 %v715
        %v1951 = vpop.f32.mrf.mxu0
        %v1952 = vadd.f32 0.0, %v1951
        %v1953 = vpop.f32.mrf.mxu0
        %v1954 = vpop.f32.mrf.mxu0
        %v1955 = vadd.f32 0.0, %v1954
        %v1956 = vpop.f32.mrf.mxu0
        %1957 = vmatprep.mubr.bf16.mxu0 0
        %1958 = vmatmul.mubr.bf16.gmra.mxu0 %v718
        %v1959 = vpop.f32.mrf.mxu0
        %v1960 = vadd.f32 0.0, %v1959
        %v1961 = vpop.f32.mrf.mxu0
        %v1962 = vpop.f32.mrf.mxu0
        %v1963 = vadd.f32 0.0, %v1962
        %v1964 = vpop.f32.mrf.mxu0
        %1965 = vmatprep.mubr.bf16.mxu0 0
        %1966 = vmatmul.mubr.bf16.gmra.mxu0 %v721
        %v1967 = vpop.f32.mrf.mxu0
        %v1968 = vadd.f32 0.0, %v1967
        %v1969 = vpop.f32.mrf.mxu0
        %v1970 = vpop.f32.mrf.mxu0
        %v1971 = vadd.f32 0.0, %v1970
        %v1972 = vpop.f32.mrf.mxu0
        %1973 = vmatprep.mubr.bf16.mxu0 0
        %1974 = vmatmul.mubr.bf16.gmra.mxu0 %v724
        %v1975 = vpop.f32.mrf.mxu0
        %v1976 = vadd.f32 0.0, %v1975
        %v1977 = vpop.f32.mrf.mxu0
        %v1978 = vpop.f32.mrf.mxu0
        %v1979 = vadd.f32 0.0, %v1978
        %v1980 = vpop.f32.mrf.mxu0
        %1981 = vmatprep.mubr.bf16.mxu0 0
        %1982 = vmatmul.mubr.bf16.gmra.mxu0 %v727
        %v1983 = vpop.f32.mrf.mxu0
        %v1984 = vadd.f32 0.0, %v1983
        %v1985 = vpop.f32.mrf.mxu0
        %v1986 = vpop.f32.mrf.mxu0
        %v1987 = vadd.f32 0.0, %v1986
        %v1988 = vpop.f32.mrf.mxu0
        %1989 = vmatprep.mubr.bf16.mxu0 0
        %1990 = vmatmul.mubr.bf16.gmra.mxu0 %v730
        %v1991 = vpop.f32.mrf.mxu0
        %v1992 = vadd.f32 0.0, %v1991
        %v1993 = vpop.f32.mrf.mxu0
        %v1994 = vpop.f32.mrf.mxu0
        %v1995 = vadd.f32 0.0, %v1994
        %v1996 = vpop.f32.mrf.mxu0
        %1997 = vmatprep.mubr.bf16.mxu0 0
        %1998 = vmatmul.mubr.bf16.gmra.mxu0 %v733
        %v1999 = vpop.f32.mrf.mxu0
        %v2000 = vadd.f32 0.0, %v1999
        %v2001 = vpop.f32.mrf.mxu0
        %v2002 = vpop.f32.mrf.mxu0
        %v2003 = vadd.f32 0.0, %v2002
        %v2004 = vpop.f32.mrf.mxu0
        %2005 = vmatprep.mubr.bf16.mxu0 0
        %2006 = vmatmul.mubr.bf16.gmra.mxu0 %v736
        %v2007 = vpop.f32.mrf.mxu0
        %v2008 = vadd.f32 0.0, %v2007
        %v2009 = vpop.f32.mrf.mxu0
        %v2010 = vpop.f32.mrf.mxu0
        %v2011 = vadd.f32 0.0, %v2010
        %v2012 = vpop.f32.mrf.mxu0
        %2013 = vmatprep.mubr.bf16.mxu0 0
        %2014 = vmatmul.mubr.bf16.gmra.mxu0 %v1856
        %v2015 = vpop.f32.mrf.mxu0
        %v2016 = vadd.f32 0.0, %v2015
        %v2017 = vpop.f32.mrf.mxu0
        %v2018 = vpop.f32.mrf.mxu0
        %v2019 = vadd.f32 0.0, %v2018
        %v2020 = vpop.f32.mrf.mxu0
        %2021 = vdwg.mxu0
        %v2022 = vadd.f32 %v1794, %v1896
        %v2023 = vadd.f32 %v1795, %v1899
        %v2024 = vadd.f32 %v1796, %v1904
        %v2025 = vadd.f32 %v1797, %v1907
        %v2026 = vadd.f32 %v1798, %v1912
        %v2027 = vadd.f32 %v1799, %v1915
        %v2028 = vadd.f32 %v1800, %v1920
        %v2029 = vadd.f32 %v1801, %v1923
        %v2030 = vadd.f32 %v1802, %v1928
        %v2031 = vadd.f32 %v1803, %v1931
        %v2032 = vadd.f32 %v1804, %v1936
        %v2033 = vadd.f32 %v1805, %v1939
        %v2034 = vadd.f32 %v1806, %v1944
        %v2035 = vadd.f32 %v1807, %v1947
        %v2036 = vadd.f32 %v1808, %v1952
        %v2037 = vadd.f32 %v1809, %v1955
        %v2038 = vadd.f32 %v1810, %v1960
        %v2039 = vadd.f32 %v1811, %v1963
        %v2040 = vadd.f32 %v1812, %v1968
        %v2041 = vadd.f32 %v1813, %v1971
        %v2042 = vadd.f32 %v1814, %v1976
        %v2043 = vadd.f32 %v1815, %v1979
        %v2044 = vadd.f32 %v1816, %v1984
        %v2045 = vadd.f32 %v1817, %v1987
        %v2046 = vadd.f32 %v1818, %v1992
        %v2047 = vadd.f32 %v1819, %v1995
        %v2048 = vadd.f32 %v1820, %v2000
        %v2049 = vadd.f32 %v1821, %v2003
        %v2050 = vadd.f32 %v1822, %v2008
        %v2051 = vadd.f32 %v1823, %v2011
        %v2052 = vadd.f32 %v1824, %v2016
        %v2053 = vadd.f32 %v1825, %v2019
        %v2055 = vrot.slane %v245, 5
        %v2056 = vrot.slane %v2055, 4
        %v2057 = vrot.slane %v246, 5
        %v2058 = vsel %vm1213, %v2056, %v2057
        %v2059 = vrot.slane %v2057, 4
        %v2060 = vrot.slane %v247, 5
        %v2061 = vsel %vm1213, %v2059, %v2060
        %s2062 = scalar_lea.vmem %s1, 10
        %v2063 = vld [vmem:[%s2062] sm:$0x3]
        %v2064 = vunpack.c.l.b16 %v2058
        %v2065 = vunpack.c.l.b16 %v2061
        %v2066 = vpack.c.b16 %v2065, %v2064
        %v2068 = vsel %vm689, %v2066, 0
        %v2071 = vsel %vm738, %v2063, 0
        %2073 = vmatprep.subr.bf16.mxu0 0
        %2074 = vmatpush1.bf16.msra.mxu0 0
        %2075 = vmatprep.subr.bf16.mxu0 0
        %2076 = vmatpush1.bf16.msra.mxu0 0
        %2077 = vmatprep.subr.bf16.mxu0 0
        %2078 = vmatpush1.bf16.msra.mxu0 0
        %2079 = vmatprep.subr.bf16.mxu0 0
        %2080 = vmatpush1.bf16.msra.mxu0 0
        %2081 = vmatprep.subr.bf16.mxu0 0
        %2082 = vmatpush1.bf16.msra.mxu0 0
        %2083 = vmatprep.subr.bf16.mxu0 0
        %2084 = vmatpush1.bf16.msra.mxu0 0
        %2085 = vmatprep.subr.bf16.mxu0 0
        %2086 = vmatpush1.bf16.msra.mxu0 0
        %2087 = vmatprep.subr.bf16.mxu0 0
        %2088 = vmatpush1.bf16.msra.mxu0 %v2071
        %2089 = vmatprep.subr.bf16.mxu0 0
        %2090 = vmatpush2.bf16.msra.mxu0 0
        %2091 = vmatprep.subr.bf16.mxu0 0
        %2092 = vmatpush2.bf16.msra.mxu0 0
        %2093 = vmatprep.subr.bf16.mxu0 0
        %2094 = vmatpush2.bf16.msra.mxu0 0
        %2095 = vmatprep.subr.bf16.mxu0 0
        %2096 = vmatpush2.bf16.msra.mxu0 0
        %2097 = vmatprep.subr.bf16.mxu0 0
        %2098 = vmatpush2.bf16.msra.mxu0 0
        %2099 = vmatprep.subr.bf16.mxu0 0
        %2100 = vmatpush2.bf16.msra.mxu0 0
        %2101 = vmatprep.subr.bf16.mxu0 0
        %2102 = vmatpush2.bf16.msra.mxu0 0
        %2103 = vmatprep.subr.bf16.mxu0 0
        %2104 = vmatpush2.bf16.msra.mxu0 0
        %2105 = vmatprep.mubr.bf16.mxu0 0
        %2106 = vmatmul.mubr.bf16.gmra.mxu0 %v1380
        %v2107 = vpop.f32.mrf.mxu0
        %v2108 = vadd.f32 0.0, %v2107
        %v2109 = vpop.f32.mrf.mxu0
        %v2110 = vpop.f32.mrf.mxu0
        %v2111 = vadd.f32 0.0, %v2110
        %v2112 = vpop.f32.mrf.mxu0
        %2113 = vmatprep.mubr.bf16.mxu0 0
        %2114 = vmatmul.mubr.bf16.gmra.mxu0 %v1383
        %v2115 = vpop.f32.mrf.mxu0
        %v2116 = vadd.f32 0.0, %v2115
        %v2117 = vpop.f32.mrf.mxu0
        %v2118 = vpop.f32.mrf.mxu0
        %v2119 = vadd.f32 0.0, %v2118
        %v2120 = vpop.f32.mrf.mxu0
        %2121 = vmatprep.mubr.bf16.mxu0 0
        %2122 = vmatmul.mubr.bf16.gmra.mxu0 %v1386
        %v2123 = vpop.f32.mrf.mxu0
        %v2124 = vadd.f32 0.0, %v2123
        %v2125 = vpop.f32.mrf.mxu0
        %v2126 = vpop.f32.mrf.mxu0
        %v2127 = vadd.f32 0.0, %v2126
        %v2128 = vpop.f32.mrf.mxu0
        %2129 = vmatprep.mubr.bf16.mxu0 0
        %2130 = vmatmul.mubr.bf16.gmra.mxu0 %v1389
        %v2131 = vpop.f32.mrf.mxu0
        %v2132 = vadd.f32 0.0, %v2131
        %v2133 = vpop.f32.mrf.mxu0
        %v2134 = vpop.f32.mrf.mxu0
        %v2135 = vadd.f32 0.0, %v2134
        %v2136 = vpop.f32.mrf.mxu0
        %2137 = vmatprep.mubr.bf16.mxu0 0
        %2138 = vmatmul.mubr.bf16.gmra.mxu0 %v1392
        %v2139 = vpop.f32.mrf.mxu0
        %v2140 = vadd.f32 0.0, %v2139
        %v2141 = vpop.f32.mrf.mxu0
        %v2142 = vpop.f32.mrf.mxu0
        %v2143 = vadd.f32 0.0, %v2142
        %v2144 = vpop.f32.mrf.mxu0
        %2145 = vmatprep.mubr.bf16.mxu0 0
        %2146 = vmatmul.mubr.bf16.gmra.mxu0 %v1395
        %v2147 = vpop.f32.mrf.mxu0
        %v2148 = vadd.f32 0.0, %v2147
        %v2149 = vpop.f32.mrf.mxu0
        %v2150 = vpop.f32.mrf.mxu0
        %v2151 = vadd.f32 0.0, %v2150
        %v2152 = vpop.f32.mrf.mxu0
        %2153 = vmatprep.mubr.bf16.mxu0 0
        %2154 = vmatmul.mubr.bf16.gmra.mxu0 %v1398
        %v2155 = vpop.f32.mrf.mxu0
        %v2156 = vadd.f32 0.0, %v2155
        %v2157 = vpop.f32.mrf.mxu0
        %v2158 = vpop.f32.mrf.mxu0
        %v2159 = vadd.f32 0.0, %v2158
        %v2160 = vpop.f32.mrf.mxu0
        %2161 = vmatprep.mubr.bf16.mxu0 0
        %2162 = vmatmul.mubr.bf16.gmra.mxu0 %v1401
        %v2163 = vpop.f32.mrf.mxu0
        %v2164 = vadd.f32 0.0, %v2163
        %v2165 = vpop.f32.mrf.mxu0
        %v2166 = vpop.f32.mrf.mxu0
        %v2167 = vadd.f32 0.0, %v2166
        %v2168 = vpop.f32.mrf.mxu0
        %2169 = vmatprep.mubr.bf16.mxu0 0
        %2170 = vmatmul.mubr.bf16.gmra.mxu0 %v1404
        %v2171 = vpop.f32.mrf.mxu0
        %v2172 = vadd.f32 0.0, %v2171
        %v2173 = vpop.f32.mrf.mxu0
        %v2174 = vpop.f32.mrf.mxu0
        %v2175 = vadd.f32 0.0, %v2174
        %v2176 = vpop.f32.mrf.mxu0
        %2177 = vmatprep.mubr.bf16.mxu0 0
        %2178 = vmatmul.mubr.bf16.gmra.mxu0 %v1407
        %v2179 = vpop.f32.mrf.mxu0
        %v2180 = vadd.f32 0.0, %v2179
        %v2181 = vpop.f32.mrf.mxu0
        %v2182 = vpop.f32.mrf.mxu0
        %v2183 = vadd.f32 0.0, %v2182
        %v2184 = vpop.f32.mrf.mxu0
        %2185 = vmatprep.mubr.bf16.mxu0 0
        %2186 = vmatmul.mubr.bf16.gmra.mxu0 %v1410
        %v2187 = vpop.f32.mrf.mxu0
        %v2188 = vadd.f32 0.0, %v2187
        %v2189 = vpop.f32.mrf.mxu0
        %v2190 = vpop.f32.mrf.mxu0
        %v2191 = vadd.f32 0.0, %v2190
        %v2192 = vpop.f32.mrf.mxu0
        %2193 = vmatprep.mubr.bf16.mxu0 0
        %2194 = vmatmul.mubr.bf16.gmra.mxu0 %v1413
        %v2195 = vpop.f32.mrf.mxu0
        %v2196 = vadd.f32 0.0, %v2195
        %v2197 = vpop.f32.mrf.mxu0
        %v2198 = vpop.f32.mrf.mxu0
        %v2199 = vadd.f32 0.0, %v2198
        %v2200 = vpop.f32.mrf.mxu0
        %2201 = vmatprep.mubr.bf16.mxu0 0
        %2202 = vmatmul.mubr.bf16.gmra.mxu0 %v1416
        %v2203 = vpop.f32.mrf.mxu0
        %v2204 = vadd.f32 0.0, %v2203
        %v2205 = vpop.f32.mrf.mxu0
        %v2206 = vpop.f32.mrf.mxu0
        %v2207 = vadd.f32 0.0, %v2206
        %v2208 = vpop.f32.mrf.mxu0
        %2209 = vmatprep.mubr.bf16.mxu0 0
        %2210 = vmatmul.mubr.bf16.gmra.mxu0 %v1419
        %v2211 = vpop.f32.mrf.mxu0
        %v2212 = vadd.f32 0.0, %v2211
        %v2213 = vpop.f32.mrf.mxu0
        %v2214 = vpop.f32.mrf.mxu0
        %v2215 = vadd.f32 0.0, %v2214
        %v2216 = vpop.f32.mrf.mxu0
        %2217 = vmatprep.mubr.bf16.mxu0 0
        %2218 = vmatmul.mubr.bf16.gmra.mxu0 %v1422
        %v2219 = vpop.f32.mrf.mxu0
        %v2220 = vadd.f32 0.0, %v2219
        %v2221 = vpop.f32.mrf.mxu0
        %v2222 = vpop.f32.mrf.mxu0
        %v2223 = vadd.f32 0.0, %v2222
        %v2224 = vpop.f32.mrf.mxu0
        %2225 = vmatprep.mubr.bf16.mxu0 0
        %2226 = vmatmul.mubr.bf16.gmra.mxu0 %v2068
        %v2227 = vpop.f32.mrf.mxu0
        %v2228 = vadd.f32 0.0, %v2227
        %v2229 = vpop.f32.mrf.mxu0
        %v2230 = vpop.f32.mrf.mxu0
        %v2231 = vadd.f32 0.0, %v2230
        %v2232 = vpop.f32.mrf.mxu0
        %2233 = vdwg.mxu0
        %v2234 = vadd.f32 %v2022, %v2108
        %v2235 = vadd.f32 %v2023, %v2111
        %v2236 = vadd.f32 %v2024, %v2116
        %v2237 = vadd.f32 %v2025, %v2119
        %v2238 = vadd.f32 %v2026, %v2124
        %v2239 = vadd.f32 %v2027, %v2127
        %v2240 = vadd.f32 %v2028, %v2132
        %v2241 = vadd.f32 %v2029, %v2135
        %v2242 = vadd.f32 %v2030, %v2140
        %v2243 = vadd.f32 %v2031, %v2143
        %v2244 = vadd.f32 %v2032, %v2148
        %v2245 = vadd.f32 %v2033, %v2151
        %v2246 = vadd.f32 %v2034, %v2156
        %v2247 = vadd.f32 %v2035, %v2159
        %v2248 = vadd.f32 %v2036, %v2164
        %v2249 = vadd.f32 %v2037, %v2167
        %v2250 = vadd.f32 %v2038, %v2172
        %v2251 = vadd.f32 %v2039, %v2175
        %v2252 = vadd.f32 %v2040, %v2180
        %v2253 = vadd.f32 %v2041, %v2183
        %v2254 = vadd.f32 %v2042, %v2188
        %v2255 = vadd.f32 %v2043, %v2191
        %v2256 = vadd.f32 %v2044, %v2196
        %v2257 = vadd.f32 %v2045, %v2199
        %v2258 = vadd.f32 %v2046, %v2204
        %v2259 = vadd.f32 %v2047, %v2207
        %v2260 = vadd.f32 %v2048, %v2212
        %v2261 = vadd.f32 %v2049, %v2215
        %v2262 = vadd.f32 %v2050, %v2220
        %v2263 = vadd.f32 %v2051, %v2223
        %v2264 = vadd.f32 %v2052, %v2228
        %v2265 = vadd.f32 %v2053, %v2231
        %s2266 = scalar_lea.vmem %s1, 12
        %v2267 = vld [vmem:[%s2266] sm:$0x3]
        %v2270 = vunpack.c.l.b16 %v248
        %v2271 = vunpack.c.l.b16 %v249
        %v2272 = vpack.c.b16 %v2271, %v2270
        %v2274 = vsel %vm689, %v2272, 0
        %v2277 = vsel %vm738, %v2267, 0
        %2279 = vmatprep.subr.bf16.mxu0 0
        %2280 = vmatpush1.bf16.msra.mxu0 0
        %2281 = vmatprep.subr.bf16.mxu0 0
        %2282 = vmatpush1.bf16.msra.mxu0 0
        %2283 = vmatprep.subr.bf16.mxu0 0
        %2284 = vmatpush1.bf16.msra.mxu0 0
        %2285 = vmatprep.subr.bf16.mxu0 0
        %2286 = vmatpush1.bf16.msra.mxu0 0
        %2287 = vmatprep.subr.bf16.mxu0 0
        %2288 = vmatpush1.bf16.msra.mxu0 0
        %2289 = vmatprep.subr.bf16.mxu0 0
        %2290 = vmatpush1.bf16.msra.mxu0 0
        %2291 = vmatprep.subr.bf16.mxu0 0
        %2292 = vmatpush1.bf16.msra.mxu0 0
        %2293 = vmatprep.subr.bf16.mxu0 0
        %2294 = vmatpush1.bf16.msra.mxu0 %v2277
        %2295 = vmatprep.subr.bf16.mxu0 0
        %2296 = vmatpush2.bf16.msra.mxu0 0
        %2297 = vmatprep.subr.bf16.mxu0 0
        %2298 = vmatpush2.bf16.msra.mxu0 0
        %2299 = vmatprep.subr.bf16.mxu0 0
        %2300 = vmatpush2.bf16.msra.mxu0 0
        %2301 = vmatprep.subr.bf16.mxu0 0
        %2302 = vmatpush2.bf16.msra.mxu0 0
        %2303 = vmatprep.subr.bf16.mxu0 0
        %2304 = vmatpush2.bf16.msra.mxu0 0
        %2305 = vmatprep.subr.bf16.mxu0 0
        %2306 = vmatpush2.bf16.msra.mxu0 0
        %2307 = vmatprep.subr.bf16.mxu0 0
        %2308 = vmatpush2.bf16.msra.mxu0 0
        %2309 = vmatprep.subr.bf16.mxu0 0
        %2310 = vmatpush2.bf16.msra.mxu0 0
        %2311 = vmatprep.mubr.bf16.mxu0 0
        %2312 = vmatmul.mubr.bf16.gmra.mxu0 %v990
        %v2313 = vpop.f32.mrf.mxu0
        %v2314 = vadd.f32 0.0, %v2313
        %v2315 = vpop.f32.mrf.mxu0
        %v2316 = vpop.f32.mrf.mxu0
        %v2317 = vadd.f32 0.0, %v2316
        %v2318 = vpop.f32.mrf.mxu0
        %2319 = vmatprep.mubr.bf16.mxu0 0
        %2320 = vmatmul.mubr.bf16.gmra.mxu0 %v993
        %v2321 = vpop.f32.mrf.mxu0
        %v2322 = vadd.f32 0.0, %v2321
        %v2323 = vpop.f32.mrf.mxu0
        %v2324 = vpop.f32.mrf.mxu0
        %v2325 = vadd.f32 0.0, %v2324
        %v2326 = vpop.f32.mrf.mxu0
        %2327 = vmatprep.mubr.bf16.mxu0 0
        %2328 = vmatmul.mubr.bf16.gmra.mxu0 %v996
        %v2329 = vpop.f32.mrf.mxu0
        %v2330 = vadd.f32 0.0, %v2329
        %v2331 = vpop.f32.mrf.mxu0
        %v2332 = vpop.f32.mrf.mxu0
        %v2333 = vadd.f32 0.0, %v2332
        %v2334 = vpop.f32.mrf.mxu0
        %2335 = vmatprep.mubr.bf16.mxu0 0
        %2336 = vmatmul.mubr.bf16.gmra.mxu0 %v999
        %v2337 = vpop.f32.mrf.mxu0
        %v2338 = vadd.f32 0.0, %v2337
        %v2339 = vpop.f32.mrf.mxu0
        %v2340 = vpop.f32.mrf.mxu0
        %v2341 = vadd.f32 0.0, %v2340
        %v2342 = vpop.f32.mrf.mxu0
        %2343 = vmatprep.mubr.bf16.mxu0 0
        %2344 = vmatmul.mubr.bf16.gmra.mxu0 %v1002
        %v2345 = vpop.f32.mrf.mxu0
        %v2346 = vadd.f32 0.0, %v2345
        %v2347 = vpop.f32.mrf.mxu0
        %v2348 = vpop.f32.mrf.mxu0
        %v2349 = vadd.f32 0.0, %v2348
        %v2350 = vpop.f32.mrf.mxu0
        %2351 = vmatprep.mubr.bf16.mxu0 0
        %2352 = vmatmul.mubr.bf16.gmra.mxu0 %v1005
        %v2353 = vpop.f32.mrf.mxu0
        %v2354 = vadd.f32 0.0, %v2353
        %v2355 = vpop.f32.mrf.mxu0
        %v2356 = vpop.f32.mrf.mxu0
        %v2357 = vadd.f32 0.0, %v2356
        %v2358 = vpop.f32.mrf.mxu0
        %2359 = vmatprep.mubr.bf16.mxu0 0
        %2360 = vmatmul.mubr.bf16.gmra.mxu0 %v1008
        %v2361 = vpop.f32.mrf.mxu0
        %v2362 = vadd.f32 0.0, %v2361
        %v2363 = vpop.f32.mrf.mxu0
        %v2364 = vpop.f32.mrf.mxu0
        %v2365 = vadd.f32 0.0, %v2364
        %v2366 = vpop.f32.mrf.mxu0
        %2367 = vmatprep.mubr.bf16.mxu0 0
        %2368 = vmatmul.mubr.bf16.gmra.mxu0 %v1011
        %v2369 = vpop.f32.mrf.mxu0
        %v2370 = vadd.f32 0.0, %v2369
        %v2371 = vpop.f32.mrf.mxu0
        %v2372 = vpop.f32.mrf.mxu0
        %v2373 = vadd.f32 0.0, %v2372
        %v2374 = vpop.f32.mrf.mxu0
        %2375 = vmatprep.mubr.bf16.mxu0 0
        %2376 = vmatmul.mubr.bf16.gmra.mxu0 %v1014
        %v2377 = vpop.f32.mrf.mxu0
        %v2378 = vadd.f32 0.0, %v2377
        %v2379 = vpop.f32.mrf.mxu0
        %v2380 = vpop.f32.mrf.mxu0
        %v2381 = vadd.f32 0.0, %v2380
        %v2382 = vpop.f32.mrf.mxu0
        %2383 = vmatprep.mubr.bf16.mxu0 0
        %2384 = vmatmul.mubr.bf16.gmra.mxu0 %v1017
        %v2385 = vpop.f32.mrf.mxu0
        %v2386 = vadd.f32 0.0, %v2385
        %v2387 = vpop.f32.mrf.mxu0
        %v2388 = vpop.f32.mrf.mxu0
        %v2389 = vadd.f32 0.0, %v2388
        %v2390 = vpop.f32.mrf.mxu0
        %2391 = vmatprep.mubr.bf16.mxu0 0
        %2392 = vmatmul.mubr.bf16.gmra.mxu0 %v1020
        %v2393 = vpop.f32.mrf.mxu0
        %v2394 = vadd.f32 0.0, %v2393
        %v2395 = vpop.f32.mrf.mxu0
        %v2396 = vpop.f32.mrf.mxu0
        %v2397 = vadd.f32 0.0, %v2396
        %v2398 = vpop.f32.mrf.mxu0
        %2399 = vmatprep.mubr.bf16.mxu0 0
        %2400 = vmatmul.mubr.bf16.gmra.mxu0 %v1023
        %v2401 = vpop.f32.mrf.mxu0
        %v2402 = vadd.f32 0.0, %v2401
        %v2403 = vpop.f32.mrf.mxu0
        %v2404 = vpop.f32.mrf.mxu0
        %v2405 = vadd.f32 0.0, %v2404
        %v2406 = vpop.f32.mrf.mxu0
        %2407 = vmatprep.mubr.bf16.mxu0 0
        %2408 = vmatmul.mubr.bf16.gmra.mxu0 %v1026
        %v2409 = vpop.f32.mrf.mxu0
        %v2410 = vadd.f32 0.0, %v2409
        %v2411 = vpop.f32.mrf.mxu0
        %v2412 = vpop.f32.mrf.mxu0
        %v2413 = vadd.f32 0.0, %v2412
        %v2414 = vpop.f32.mrf.mxu0
        %2415 = vmatprep.mubr.bf16.mxu0 0
        %2416 = vmatmul.mubr.bf16.gmra.mxu0 %v1029
        %v2417 = vpop.f32.mrf.mxu0
        %v2418 = vadd.f32 0.0, %v2417
        %v2419 = vpop.f32.mrf.mxu0
        %v2420 = vpop.f32.mrf.mxu0
        %v2421 = vadd.f32 0.0, %v2420
        %v2422 = vpop.f32.mrf.mxu0
        %2423 = vmatprep.mubr.bf16.mxu0 0
        %2424 = vmatmul.mubr.bf16.gmra.mxu0 %v1628
        %v2425 = vpop.f32.mrf.mxu0
        %v2426 = vadd.f32 0.0, %v2425
        %v2427 = vpop.f32.mrf.mxu0
        %v2428 = vpop.f32.mrf.mxu0
        %v2429 = vadd.f32 0.0, %v2428
        %v2430 = vpop.f32.mrf.mxu0
        %2431 = vmatprep.mubr.bf16.mxu0 0
        %2432 = vmatmul.mubr.bf16.gmra.mxu0 %v2274
        %v2433 = vpop.f32.mrf.mxu0
        %v2434 = vadd.f32 0.0, %v2433
        %v2435 = vpop.f32.mrf.mxu0
        %v2436 = vpop.f32.mrf.mxu0
        %v2437 = vadd.f32 0.0, %v2436
        %v2438 = vpop.f32.mrf.mxu0
        %2439 = vdwg.mxu0
        %v2440 = vadd.f32 %v2234, %v2314
        %v2441 = vadd.f32 %v2235, %v2317
        %v2442 = vadd.f32 %v2236, %v2322
        %v2443 = vadd.f32 %v2237, %v2325
        %v2444 = vadd.f32 %v2238, %v2330
        %v2445 = vadd.f32 %v2239, %v2333
        %v2446 = vadd.f32 %v2240, %v2338
        %v2447 = vadd.f32 %v2241, %v2341
        %v2448 = vadd.f32 %v2242, %v2346
        %v2449 = vadd.f32 %v2243, %v2349
        %v2450 = vadd.f32 %v2244, %v2354
        %v2451 = vadd.f32 %v2245, %v2357
        %v2452 = vadd.f32 %v2246, %v2362
        %v2453 = vadd.f32 %v2247, %v2365
        %v2454 = vadd.f32 %v2248, %v2370
        %v2455 = vadd.f32 %v2249, %v2373
        %v2456 = vadd.f32 %v2250, %v2378
        %v2457 = vadd.f32 %v2251, %v2381
        %v2458 = vadd.f32 %v2252, %v2386
        %v2459 = vadd.f32 %v2253, %v2389
        %v2460 = vadd.f32 %v2254, %v2394
        %v2461 = vadd.f32 %v2255, %v2397
        %v2462 = vadd.f32 %v2256, %v2402
        %v2463 = vadd.f32 %v2257, %v2405
        %v2464 = vadd.f32 %v2258, %v2410
        %v2465 = vadd.f32 %v2259, %v2413
        %v2466 = vadd.f32 %v2260, %v2418
        %v2467 = vadd.f32 %v2261, %v2421
        %v2468 = vadd.f32 %v2262, %v2426
        %v2469 = vadd.f32 %v2263, %v2429
        %v2470 = vadd.f32 %v2264, %v2434
        %v2471 = vadd.f32 %v2265, %v2437
        %v2473 = vshrl.u32 %v248, 16
        %v2475 = vrot.slane %v2473, 4
        %v2476 = vshll.u32 %v248, 16
        %v2478 = vrot.slane %v2476, 5
        %v2479 = vor.u32 %v2475, %v2478
        %v2480 = vrot.slane %v2479, 4
        %v2482 = vshll.u32 %v249, 16
        %v2484 = vrot.slane %v2482, 5
        %v2485 = vsel %vm254, %v2480, %v2484
        %v2486 = vshrl.u32 %v249, 16
        %v2488 = vrot.slane %v2486, 4
        %v2489 = vor.u32 %v2488, %v2484
        %v2490 = vrot.slane %v2489, 4
        %v2492 = vshll.u32 %v250, 16
        %v2494 = vrot.slane %v2492, 5
        %v2495 = vsel %vm254, %v2490, %v2494
        %s2496 = scalar_lea.vmem %s1, 14
        %v2497 = vld [vmem:[%s2496] sm:$0x3]
        %v2498 = vunpack.c.l.b16 %v2485
        %v2499 = vunpack.c.l.b16 %v2495
        %v2500 = vpack.c.b16 %v2499, %v2498
        %v2502 = vsel %vm689, %v2500, 0
        %v2505 = vsel %vm738, %v2497, 0
        %2507 = vmatprep.subr.bf16.mxu0 0
        %2508 = vmatpush1.bf16.msra.mxu0 0
        %2509 = vmatprep.subr.bf16.mxu0 0
        %2510 = vmatpush1.bf16.msra.mxu0 0
        %2511 = vmatprep.subr.bf16.mxu0 0
        %2512 = vmatpush1.bf16.msra.mxu0 0
        %2513 = vmatprep.subr.bf16.mxu0 0
        %2514 = vmatpush1.bf16.msra.mxu0 0
        %2515 = vmatprep.subr.bf16.mxu0 0
        %2516 = vmatpush1.bf16.msra.mxu0 0
        %2517 = vmatprep.subr.bf16.mxu0 0
        %2518 = vmatpush1.bf16.msra.mxu0 0
        %2519 = vmatprep.subr.bf16.mxu0 0
        %2520 = vmatpush1.bf16.msra.mxu0 0
        %2521 = vmatprep.subr.bf16.mxu0 0
        %2522 = vmatpush1.bf16.msra.mxu0 %v2505
        %2523 = vmatprep.subr.bf16.mxu0 0
        %2524 = vmatpush2.bf16.msra.mxu0 0
        %2525 = vmatprep.subr.bf16.mxu0 0
        %2526 = vmatpush2.bf16.msra.mxu0 0
        %2527 = vmatprep.subr.bf16.mxu0 0
        %2528 = vmatpush2.bf16.msra.mxu0 0
        %2529 = vmatprep.subr.bf16.mxu0 0
        %2530 = vmatpush2.bf16.msra.mxu0 0
        %2531 = vmatprep.subr.bf16.mxu0 0
        %2532 = vmatpush2.bf16.msra.mxu0 0
        %2533 = vmatprep.subr.bf16.mxu0 0
        %2534 = vmatpush2.bf16.msra.mxu0 0
        %2535 = vmatprep.subr.bf16.mxu0 0
        %2536 = vmatpush2.bf16.msra.mxu0 0
        %2537 = vmatprep.subr.bf16.mxu0 0
        %2538 = vmatpush2.bf16.msra.mxu0 0
        %2539 = vmatprep.mubr.bf16.mxu0 0
        %2540 = vmatmul.mubr.bf16.gmra.mxu0 %v697
        %v2541 = vpop.f32.mrf.mxu0
        %v2542 = vadd.f32 0.0, %v2541
        %v2543 = vpop.f32.mrf.mxu0
        %v2544 = vpop.f32.mrf.mxu0
        %v2545 = vadd.f32 0.0, %v2544
        %v2546 = vpop.f32.mrf.mxu0
        %2547 = vmatprep.mubr.bf16.mxu0 0
        %2548 = vmatmul.mubr.bf16.gmra.mxu0 %v700
        %v2549 = vpop.f32.mrf.mxu0
        %v2550 = vadd.f32 0.0, %v2549
        %v2551 = vpop.f32.mrf.mxu0
        %v2552 = vpop.f32.mrf.mxu0
        %v2553 = vadd.f32 0.0, %v2552
        %v2554 = vpop.f32.mrf.mxu0
        %2555 = vmatprep.mubr.bf16.mxu0 0
        %2556 = vmatmul.mubr.bf16.gmra.mxu0 %v703
        %v2557 = vpop.f32.mrf.mxu0
        %v2558 = vadd.f32 0.0, %v2557
        %v2559 = vpop.f32.mrf.mxu0
        %v2560 = vpop.f32.mrf.mxu0
        %v2561 = vadd.f32 0.0, %v2560
        %v2562 = vpop.f32.mrf.mxu0
        %2563 = vmatprep.mubr.bf16.mxu0 0
        %2564 = vmatmul.mubr.bf16.gmra.mxu0 %v706
        %v2565 = vpop.f32.mrf.mxu0
        %v2566 = vadd.f32 0.0, %v2565
        %v2567 = vpop.f32.mrf.mxu0
        %v2568 = vpop.f32.mrf.mxu0
        %v2569 = vadd.f32 0.0, %v2568
        %v2570 = vpop.f32.mrf.mxu0
        %2571 = vmatprep.mubr.bf16.mxu0 0
        %2572 = vmatmul.mubr.bf16.gmra.mxu0 %v709
        %v2573 = vpop.f32.mrf.mxu0
        %v2574 = vadd.f32 0.0, %v2573
        %v2575 = vpop.f32.mrf.mxu0
        %v2576 = vpop.f32.mrf.mxu0
        %v2577 = vadd.f32 0.0, %v2576
        %v2578 = vpop.f32.mrf.mxu0
        %2579 = vmatprep.mubr.bf16.mxu0 0
        %2580 = vmatmul.mubr.bf16.gmra.mxu0 %v712
        %v2581 = vpop.f32.mrf.mxu0
        %v2582 = vadd.f32 0.0, %v2581
        %v2583 = vpop.f32.mrf.mxu0
        %v2584 = vpop.f32.mrf.mxu0
        %v2585 = vadd.f32 0.0, %v2584
        %v2586 = vpop.f32.mrf.mxu0
        %2587 = vmatprep.mubr.bf16.mxu0 0
        %2588 = vmatmul.mubr.bf16.gmra.mxu0 %v715
        %v2589 = vpop.f32.mrf.mxu0
        %v2590 = vadd.f32 0.0, %v2589
        %v2591 = vpop.f32.mrf.mxu0
        %v2592 = vpop.f32.mrf.mxu0
        %v2593 = vadd.f32 0.0, %v2592
        %v2594 = vpop.f32.mrf.mxu0
        %2595 = vmatprep.mubr.bf16.mxu0 0
        %2596 = vmatmul.mubr.bf16.gmra.mxu0 %v718
        %v2597 = vpop.f32.mrf.mxu0
        %v2598 = vadd.f32 0.0, %v2597
        %v2599 = vpop.f32.mrf.mxu0
        %v2600 = vpop.f32.mrf.mxu0
        %v2601 = vadd.f32 0.0, %v2600
        %v2602 = vpop.f32.mrf.mxu0
        %2603 = vmatprep.mubr.bf16.mxu0 0
        %2604 = vmatmul.mubr.bf16.gmra.mxu0 %v721
        %v2605 = vpop.f32.mrf.mxu0
        %v2606 = vadd.f32 0.0, %v2605
        %v2607 = vpop.f32.mrf.mxu0
        %v2608 = vpop.f32.mrf.mxu0
        %v2609 = vadd.f32 0.0, %v2608
        %v2610 = vpop.f32.mrf.mxu0
        %2611 = vmatprep.mubr.bf16.mxu0 0
        %2612 = vmatmul.mubr.bf16.gmra.mxu0 %v724
        %v2613 = vpop.f32.mrf.mxu0
        %v2614 = vadd.f32 0.0, %v2613
        %v2615 = vpop.f32.mrf.mxu0
        %v2616 = vpop.f32.mrf.mxu0
        %v2617 = vadd.f32 0.0, %v2616
        %v2618 = vpop.f32.mrf.mxu0
        %2619 = vmatprep.mubr.bf16.mxu0 0
        %2620 = vmatmul.mubr.bf16.gmra.mxu0 %v727
        %v2621 = vpop.f32.mrf.mxu0
        %v2622 = vadd.f32 0.0, %v2621
        %v2623 = vpop.f32.mrf.mxu0
        %v2624 = vpop.f32.mrf.mxu0
        %v2625 = vadd.f32 0.0, %v2624
        %v2626 = vpop.f32.mrf.mxu0
        %2627 = vmatprep.mubr.bf16.mxu0 0
        %2628 = vmatmul.mubr.bf16.gmra.mxu0 %v730
        %v2629 = vpop.f32.mrf.mxu0
        %v2630 = vadd.f32 0.0, %v2629
        %v2631 = vpop.f32.mrf.mxu0
        %v2632 = vpop.f32.mrf.mxu0
        %v2633 = vadd.f32 0.0, %v2632
        %v2634 = vpop.f32.mrf.mxu0
        %2635 = vmatprep.mubr.bf16.mxu0 0
        %2636 = vmatmul.mubr.bf16.gmra.mxu0 %v733
        %v2637 = vpop.f32.mrf.mxu0
        %v2638 = vadd.f32 0.0, %v2637
        %v2639 = vpop.f32.mrf.mxu0
        %v2640 = vpop.f32.mrf.mxu0
        %v2641 = vadd.f32 0.0, %v2640
        %v2642 = vpop.f32.mrf.mxu0
        %2643 = vmatprep.mubr.bf16.mxu0 0
        %2644 = vmatmul.mubr.bf16.gmra.mxu0 %v736
        %v2645 = vpop.f32.mrf.mxu0
        %v2646 = vadd.f32 0.0, %v2645
        %v2647 = vpop.f32.mrf.mxu0
        %v2648 = vpop.f32.mrf.mxu0
        %v2649 = vadd.f32 0.0, %v2648
        %v2650 = vpop.f32.mrf.mxu0
        %2651 = vmatprep.mubr.bf16.mxu0 0
        %2652 = vmatmul.mubr.bf16.gmra.mxu0 %v1856
        %v2653 = vpop.f32.mrf.mxu0
        %v2654 = vadd.f32 0.0, %v2653
        %v2655 = vpop.f32.mrf.mxu0
        %v2656 = vpop.f32.mrf.mxu0
        %v2657 = vadd.f32 0.0, %v2656
        %v2658 = vpop.f32.mrf.mxu0
        %2659 = vmatprep.mubr.bf16.mxu0 0
        %2660 = vmatmul.mubr.bf16.gmra.mxu0 %v2502
        %v2661 = vpop.f32.mrf.mxu0
        %v2662 = vadd.f32 0.0, %v2661
        %v2663 = vpop.f32.mrf.mxu0
        %v2664 = vpop.f32.mrf.mxu0
        %v2665 = vadd.f32 0.0, %v2664
        %v2666 = vpop.f32.mrf.mxu0
        %2667 = vdwg.mxu0
        %v2668 = vadd.f32 %v2440, %v2542
        %v2669 = vadd.f32 %v2441, %v2545
        %v2670 = vadd.f32 %v2442, %v2550
        %v2671 = vadd.f32 %v2443, %v2553
        %v2672 = vadd.f32 %v2444, %v2558
        %v2673 = vadd.f32 %v2445, %v2561
        %v2674 = vadd.f32 %v2446, %v2566
        %v2675 = vadd.f32 %v2447, %v2569
        %v2676 = vadd.f32 %v2448, %v2574
        %v2677 = vadd.f32 %v2449, %v2577
        %v2678 = vadd.f32 %v2450, %v2582
        %v2679 = vadd.f32 %v2451, %v2585
        %v2680 = vadd.f32 %v2452, %v2590
        %v2681 = vadd.f32 %v2453, %v2593
        %v2682 = vadd.f32 %v2454, %v2598
        %v2683 = vadd.f32 %v2455, %v2601
        %v2684 = vadd.f32 %v2456, %v2606
        %v2685 = vadd.f32 %v2457, %v2609
        %v2686 = vadd.f32 %v2458, %v2614
        %v2687 = vadd.f32 %v2459, %v2617
        %v2688 = vadd.f32 %v2460, %v2622
        %v2689 = vadd.f32 %v2461, %v2625
        %v2690 = vadd.f32 %v2462, %v2630
        %v2691 = vadd.f32 %v2463, %v2633
        %v2692 = vadd.f32 %v2464, %v2638
        %v2693 = vadd.f32 %v2465, %v2641
        %v2694 = vadd.f32 %v2466, %v2646
        %v2695 = vadd.f32 %v2467, %v2649
        %v2696 = vadd.f32 %v2468, %v2654
        %v2697 = vadd.f32 %v2469, %v2657
        %v2698 = vadd.f32 %v2470, %v2662
        %v2699 = vadd.f32 %v2471, %v2665
        %v2701 = vrot.slane %v248, 5
        %v2702 = vrot.slane %v2701, 4
        %v2703 = vrot.slane %v249, 5
        %v2704 = vsel %vm1213, %v2702, %v2703
        %v2705 = vrot.slane %v2703, 4
        %v2706 = vrot.slane %v250, 5
        %v2707 = vsel %vm1213, %v2705, %v2706
        %s2708 = scalar_lea.vmem %s1, 16
        %v2709 = vld [vmem:[%s2708] sm:$0x3]
        %v2710 = vunpack.c.l.b16 %v2704
        %v2711 = vunpack.c.l.b16 %v2707
        %v2712 = vpack.c.b16 %v2711, %v2710
        %v2714 = vsel %vm689, %v2712, 0
        %v2717 = vsel %vm738, %v2709, 0
        %2719 = vmatprep.subr.bf16.mxu0 0
        %2720 = vmatpush1.bf16.msra.mxu0 0
        %2721 = vmatprep.subr.bf16.mxu0 0
        %2722 = vmatpush1.bf16.msra.mxu0 0
        %2723 = vmatprep.subr.bf16.mxu0 0
        %2724 = vmatpush1.bf16.msra.mxu0 0
        %2725 = vmatprep.subr.bf16.mxu0 0
        %2726 = vmatpush1.bf16.msra.mxu0 0
        %2727 = vmatprep.subr.bf16.mxu0 0
        %2728 = vmatpush1.bf16.msra.mxu0 0
        %2729 = vmatprep.subr.bf16.mxu0 0
        %2730 = vmatpush1.bf16.msra.mxu0 0
        %2731 = vmatprep.subr.bf16.mxu0 0
        %2732 = vmatpush1.bf16.msra.mxu0 0
        %2733 = vmatprep.subr.bf16.mxu0 0
        %2734 = vmatpush1.bf16.msra.mxu0 %v2717
        %2735 = vmatprep.subr.bf16.mxu0 0
        %2736 = vmatpush2.bf16.msra.mxu0 0
        %2737 = vmatprep.subr.bf16.mxu0 0
        %2738 = vmatpush2.bf16.msra.mxu0 0
        %2739 = vmatprep.subr.bf16.mxu0 0
        %2740 = vmatpush2.bf16.msra.mxu0 0
        %2741 = vmatprep.subr.bf16.mxu0 0
        %2742 = vmatpush2.bf16.msra.mxu0 0
        %2743 = vmatprep.subr.bf16.mxu0 0
        %2744 = vmatpush2.bf16.msra.mxu0 0
        %2745 = vmatprep.subr.bf16.mxu0 0
        %2746 = vmatpush2.bf16.msra.mxu0 0
        %2747 = vmatprep.subr.bf16.mxu0 0
        %2748 = vmatpush2.bf16.msra.mxu0 0
        %2749 = vmatprep.subr.bf16.mxu0 0
        %2750 = vmatpush2.bf16.msra.mxu0 0
        %2751 = vmatprep.mubr.bf16.mxu0 0
        %2752 = vmatmul.mubr.bf16.gmra.mxu0 %v1383
        %v2753 = vpop.f32.mrf.mxu0
        %v2754 = vadd.f32 0.0, %v2753
        %v2755 = vpop.f32.mrf.mxu0
        %v2756 = vpop.f32.mrf.mxu0
        %v2757 = vadd.f32 0.0, %v2756
        %v2758 = vpop.f32.mrf.mxu0
        %2759 = vmatprep.mubr.bf16.mxu0 0
        %2760 = vmatmul.mubr.bf16.gmra.mxu0 %v1386
        %v2761 = vpop.f32.mrf.mxu0
        %v2762 = vadd.f32 0.0, %v2761
        %v2763 = vpop.f32.mrf.mxu0
        %v2764 = vpop.f32.mrf.mxu0
        %v2765 = vadd.f32 0.0, %v2764
        %v2766 = vpop.f32.mrf.mxu0
        %2767 = vmatprep.mubr.bf16.mxu0 0
        %2768 = vmatmul.mubr.bf16.gmra.mxu0 %v1389
        %v2769 = vpop.f32.mrf.mxu0
        %v2770 = vadd.f32 0.0, %v2769
        %v2771 = vpop.f32.mrf.mxu0
        %v2772 = vpop.f32.mrf.mxu0
        %v2773 = vadd.f32 0.0, %v2772
        %v2774 = vpop.f32.mrf.mxu0
        %2775 = vmatprep.mubr.bf16.mxu0 0
        %2776 = vmatmul.mubr.bf16.gmra.mxu0 %v1392
        %v2777 = vpop.f32.mrf.mxu0
        %v2778 = vadd.f32 0.0, %v2777
        %v2779 = vpop.f32.mrf.mxu0
        %v2780 = vpop.f32.mrf.mxu0
        %v2781 = vadd.f32 0.0, %v2780
        %v2782 = vpop.f32.mrf.mxu0
        %2783 = vmatprep.mubr.bf16.mxu0 0
        %2784 = vmatmul.mubr.bf16.gmra.mxu0 %v1395
        %v2785 = vpop.f32.mrf.mxu0
        %v2786 = vadd.f32 0.0, %v2785
        %v2787 = vpop.f32.mrf.mxu0
        %v2788 = vpop.f32.mrf.mxu0
        %v2789 = vadd.f32 0.0, %v2788
        %v2790 = vpop.f32.mrf.mxu0
        %2791 = vmatprep.mubr.bf16.mxu0 0
        %2792 = vmatmul.mubr.bf16.gmra.mxu0 %v1398
        %v2793 = vpop.f32.mrf.mxu0
        %v2794 = vadd.f32 0.0, %v2793
        %v2795 = vpop.f32.mrf.mxu0
        %v2796 = vpop.f32.mrf.mxu0
        %v2797 = vadd.f32 0.0, %v2796
        %v2798 = vpop.f32.mrf.mxu0
        %2799 = vmatprep.mubr.bf16.mxu0 0
        %2800 = vmatmul.mubr.bf16.gmra.mxu0 %v1401
        %v2801 = vpop.f32.mrf.mxu0
        %v2802 = vadd.f32 0.0, %v2801
        %v2803 = vpop.f32.mrf.mxu0
        %v2804 = vpop.f32.mrf.mxu0
        %v2805 = vadd.f32 0.0, %v2804
        %v2806 = vpop.f32.mrf.mxu0
        %2807 = vmatprep.mubr.bf16.mxu0 0
        %2808 = vmatmul.mubr.bf16.gmra.mxu0 %v1404
        %v2809 = vpop.f32.mrf.mxu0
        %v2810 = vadd.f32 0.0, %v2809
        %v2811 = vpop.f32.mrf.mxu0
        %v2812 = vpop.f32.mrf.mxu0
        %v2813 = vadd.f32 0.0, %v2812
        %v2814 = vpop.f32.mrf.mxu0
        %2815 = vmatprep.mubr.bf16.mxu0 0
        %2816 = vmatmul.mubr.bf16.gmra.mxu0 %v1407
        %v2817 = vpop.f32.mrf.mxu0
        %v2818 = vadd.f32 0.0, %v2817
        %v2819 = vpop.f32.mrf.mxu0
        %v2820 = vpop.f32.mrf.mxu0
        %v2821 = vadd.f32 0.0, %v2820
        %v2822 = vpop.f32.mrf.mxu0
        %2823 = vmatprep.mubr.bf16.mxu0 0
        %2824 = vmatmul.mubr.bf16.gmra.mxu0 %v1410
        %v2825 = vpop.f32.mrf.mxu0
        %v2826 = vadd.f32 0.0, %v2825
        %v2827 = vpop.f32.mrf.mxu0
        %v2828 = vpop.f32.mrf.mxu0
        %v2829 = vadd.f32 0.0, %v2828
        %v2830 = vpop.f32.mrf.mxu0
        %2831 = vmatprep.mubr.bf16.mxu0 0
        %2832 = vmatmul.mubr.bf16.gmra.mxu0 %v1413
        %v2833 = vpop.f32.mrf.mxu0
        %v2834 = vadd.f32 0.0, %v2833
        %v2835 = vpop.f32.mrf.mxu0
        %v2836 = vpop.f32.mrf.mxu0
        %v2837 = vadd.f32 0.0, %v2836
        %v2838 = vpop.f32.mrf.mxu0
        %2839 = vmatprep.mubr.bf16.mxu0 0
        %2840 = vmatmul.mubr.bf16.gmra.mxu0 %v1416
        %v2841 = vpop.f32.mrf.mxu0
        %v2842 = vadd.f32 0.0, %v2841
        %v2843 = vpop.f32.mrf.mxu0
        %v2844 = vpop.f32.mrf.mxu0
        %v2845 = vadd.f32 0.0, %v2844
        %v2846 = vpop.f32.mrf.mxu0
        %2847 = vmatprep.mubr.bf16.mxu0 0
        %2848 = vmatmul.mubr.bf16.gmra.mxu0 %v1419
        %v2849 = vpop.f32.mrf.mxu0
        %v2850 = vadd.f32 0.0, %v2849
        %v2851 = vpop.f32.mrf.mxu0
        %v2852 = vpop.f32.mrf.mxu0
        %v2853 = vadd.f32 0.0, %v2852
        %v2854 = vpop.f32.mrf.mxu0
        %2855 = vmatprep.mubr.bf16.mxu0 0
        %2856 = vmatmul.mubr.bf16.gmra.mxu0 %v1422
        %v2857 = vpop.f32.mrf.mxu0
        %v2858 = vadd.f32 0.0, %v2857
        %v2859 = vpop.f32.mrf.mxu0
        %v2860 = vpop.f32.mrf.mxu0
        %v2861 = vadd.f32 0.0, %v2860
        %v2862 = vpop.f32.mrf.mxu0
        %2863 = vmatprep.mubr.bf16.mxu0 0
        %2864 = vmatmul.mubr.bf16.gmra.mxu0 %v2068
        %v2865 = vpop.f32.mrf.mxu0
        %v2866 = vadd.f32 0.0, %v2865
        %v2867 = vpop.f32.mrf.mxu0
        %v2868 = vpop.f32.mrf.mxu0
        %v2869 = vadd.f32 0.0, %v2868
        %v2870 = vpop.f32.mrf.mxu0
        %2871 = vmatprep.mubr.bf16.mxu0 0
        %2872 = vmatmul.mubr.bf16.gmra.mxu0 %v2714
        %v2873 = vpop.f32.mrf.mxu0
        %v2874 = vadd.f32 0.0, %v2873
        %v2875 = vpop.f32.mrf.mxu0
        %v2876 = vpop.f32.mrf.mxu0
        %v2877 = vadd.f32 0.0, %v2876
        %v2878 = vpop.f32.mrf.mxu0
        %2879 = vdwg.mxu0
        %v2880 = vadd.f32 %v2668, %v2754
        %v2881 = vadd.f32 %v2669, %v2757
        %v2882 = vadd.f32 %v2670, %v2762
        %v2883 = vadd.f32 %v2671, %v2765
        %v2884 = vadd.f32 %v2672, %v2770
        %v2885 = vadd.f32 %v2673, %v2773
        %v2886 = vadd.f32 %v2674, %v2778
        %v2887 = vadd.f32 %v2675, %v2781
        %v2888 = vadd.f32 %v2676, %v2786
        %v2889 = vadd.f32 %v2677, %v2789
        %v2890 = vadd.f32 %v2678, %v2794
        %v2891 = vadd.f32 %v2679, %v2797
        %v2892 = vadd.f32 %v2680, %v2802
        %v2893 = vadd.f32 %v2681, %v2805
        %v2894 = vadd.f32 %v2682, %v2810
        %v2895 = vadd.f32 %v2683, %v2813
        %v2896 = vadd.f32 %v2684, %v2818
        %v2897 = vadd.f32 %v2685, %v2821
        %v2898 = vadd.f32 %v2686, %v2826
        %v2899 = vadd.f32 %v2687, %v2829
        %v2900 = vadd.f32 %v2688, %v2834
        %v2901 = vadd.f32 %v2689, %v2837
        %v2902 = vadd.f32 %v2690, %v2842
        %v2903 = vadd.f32 %v2691, %v2845
        %v2904 = vadd.f32 %v2692, %v2850
        %v2905 = vadd.f32 %v2693, %v2853
        %v2906 = vadd.f32 %v2694, %v2858
        %v2907 = vadd.f32 %v2695, %v2861
        %v2908 = vadd.f32 %v2696, %v2866
        %v2909 = vadd.f32 %v2697, %v2869
        %v2910 = vadd.f32 %v2698, %v2874
        %v2911 = vadd.f32 %v2699, %v2877
        %p2912 = scmp.eq.s32.totalorder %s26, 0
        // Predicated region
        $region29: #{tpu_custom_call.1} parent=27 // pred_check
          %p2913 = pneg %p2912
        $region30: #{tpu_custom_call.1} parent=27 // pred_check_branch
          %2915 = sbr.rel (%p2913) target = $region32
        $region31: #{tpu_custom_call.1} parent=27 // pred_region
          %2916 = vst [vmem:[%s179] sm:$0xff] 0.0
          %2917 = vst [vmem:[%s186] sm:$0xff] 0.0
        $region32: #{tpu_custom_call.1} parent=27 // pred_fallthru
          _
        %v2918 = vld [vmem:[%s179] sm:$0xff]
        %v2919 = vadd.f32 %v2880, %v2881
        %v2920 = vadd.f32 %v2919, %v2882
        %v2921 = vadd.f32 %v2920, %v2883
        %v2922 = vadd.f32 %v2921, %v2884
        %v2923 = vadd.f32 %v2922, %v2885
        %v2924 = vadd.f32 %v2923, %v2886
        %v2925 = vadd.f32 %v2924, %v2887
        %v2926 = vadd.f32 %v2925, %v2888
        %v2927 = vadd.f32 %v2926, %v2889
        %v2928 = vadd.f32 %v2927, %v2890
        %v2929 = vadd.f32 %v2928, %v2891
        %v2930 = vadd.f32 %v2929, %v2892
        %v2931 = vadd.f32 %v2930, %v2893
        %v2932 = vadd.f32 %v2931, %v2894
        %v2933 = vadd.f32 %v2932, %v2895
        %v2934 = vadd.f32 %v2933, %v2896
        %v2935 = vadd.f32 %v2934, %v2897
        %v2936 = vadd.f32 %v2935, %v2898
        %v2937 = vadd.f32 %v2936, %v2899
        %v2938 = vadd.f32 %v2937, %v2900
        %v2939 = vadd.f32 %v2938, %v2901
        %v2940 = vadd.f32 %v2939, %v2902
        %v2941 = vadd.f32 %v2940, %v2903
        %v2942 = vadd.f32 %v2941, %v2904
        %v2943 = vadd.f32 %v2942, %v2905
        %v2944 = vadd.f32 %v2943, %v2906
        %v2945 = vadd.f32 %v2944, %v2907
        %v2946 = vadd.f32 %v2945, %v2908
        %v2947 = vadd.f32 %v2946, %v2909
        %v2948 = vadd.f32 %v2947, %v2910
        %v2949 = vadd.f32 %v2948, %v2911
        %v2950 = vadd.f32 %v2918, %v2949
        %2951 = vst [vmem:[%s179] sm:$0xff] %v2950
        %v2952 = vld [vmem:[%s186] sm:$0xff]
        %v2953 = vmul.f32 %v2880, %v2880
        %v2954 = vmul.f32 %v2881, %v2881
        %v2955 = vmul.f32 %v2882, %v2882
        %v2956 = vmul.f32 %v2883, %v2883
        %v2957 = vmul.f32 %v2884, %v2884
        %v2958 = vmul.f32 %v2885, %v2885
        %v2959 = vmul.f32 %v2886, %v2886
        %v2960 = vmul.f32 %v2887, %v2887
        %v2961 = vmul.f32 %v2888, %v2888
        %v2962 = vmul.f32 %v2889, %v2889
        %v2963 = vmul.f32 %v2890, %v2890
        %v2964 = vmul.f32 %v2891, %v2891
        %v2965 = vmul.f32 %v2892, %v2892
        %v2966 = vmul.f32 %v2893, %v2893
        %v2967 = vmul.f32 %v2894, %v2894
        %v2968 = vmul.f32 %v2895, %v2895
        %v2969 = vmul.f32 %v2896, %v2896
        %v2970 = vmul.f32 %v2897, %v2897
        %v2971 = vmul.f32 %v2898, %v2898
        %v2972 = vmul.f32 %v2899, %v2899
        %v2973 = vmul.f32 %v2900, %v2900
        %v2974 = vmul.f32 %v2901, %v2901
        %v2975 = vmul.f32 %v2902, %v2902
        %v2976 = vmul.f32 %v2903, %v2903
        %v2977 = vmul.f32 %v2904, %v2904
        %v2978 = vmul.f32 %v2905, %v2905
        %v2979 = vmul.f32 %v2906, %v2906
        %v2980 = vmul.f32 %v2907, %v2907
        %v2981 = vmul.f32 %v2908, %v2908
        %v2982 = vmul.f32 %v2909, %v2909
        %v2983 = vmul.f32 %v2910, %v2910
        %v2984 = vmul.f32 %v2911, %v2911
        %v2985 = vadd.f32 %v2953, %v2954
        %v2986 = vadd.f32 %v2985, %v2955
        %v2987 = vadd.f32 %v2986, %v2956
        %v2988 = vadd.f32 %v2987, %v2957
        %v2989 = vadd.f32 %v2988, %v2958
        %v2990 = vadd.f32 %v2989, %v2959
        %v2991 = vadd.f32 %v2990, %v2960
        %v2992 = vadd.f32 %v2991, %v2961
        %v2993 = vadd.f32 %v2992, %v2962
        %v2994 = vadd.f32 %v2993, %v2963
        %v2995 = vadd.f32 %v2994, %v2964
        %v2996 = vadd.f32 %v2995, %v2965
        %v2997 = vadd.f32 %v2996, %v2966
        %v2998 = vadd.f32 %v2997, %v2967
        %v2999 = vadd.f32 %v2998, %v2968
        %v3000 = vadd.f32 %v2999, %v2969
        %v3001 = vadd.f32 %v3000, %v2970
        %v3002 = vadd.f32 %v3001, %v2971
        %v3003 = vadd.f32 %v3002, %v2972
        %v3004 = vadd.f32 %v3003, %v2973
        %v3005 = vadd.f32 %v3004, %v2974
        %v3006 = vadd.f32 %v3005, %v2975
        %v3007 = vadd.f32 %v3006, %v2976
        %v3008 = vadd.f32 %v3007, %v2977
        %v3009 = vadd.f32 %v3008, %v2978
        %v3010 = vadd.f32 %v3009, %v2979
        %v3011 = vadd.f32 %v3010, %v2980
        %v3012 = vadd.f32 %v3011, %v2981
        %v3013 = vadd.f32 %v3012, %v2982
        %v3014 = vadd.f32 %v3013, %v2983
        %v3015 = vadd.f32 %v3014, %v2984
        %v3016 = vadd.f32 %v2952, %v3015
        %3017 = vst [vmem:[%s186] sm:$0xff] %v3016
        %s3018 = sand.u32 %s88, 1
        %s3019 = scalar_lea.sflag [#allocation3], %s3018
        %s3020 = sand.u32 %s88, 1
        %s3021 = smul.addr %s3020, 8
        %s3022 = scalar_lea.vmem [#allocation2], %s3021
        %s3023 = sand.u32 %s114, 1
        %s3024 = scalar_lea.sflag [#allocation5], %s3023
        %s3025 = sand.u32 %s114, 1
        %s3026 = smul.addr %s3025, 8
        %s3027 = scalar_lea.vmem [#allocation4], %s3026
        // Predicated region
        $region33: #{tpu_custom_call.1} parent=27 // pred_check
          %p3028 = pneg %p98
        $region34: #{tpu_custom_call.1} parent=27 // pred_check_branch
          %3030 = sbr.rel (%p3028) target = $region36
        $region35: #{tpu_custom_call.1} parent=27 // pred_region
          %s3032 = ssub.s32 128, 128
          %3033 = vsyncadd %s3019, %s3032
          %s3034 = smul.addr %s25, 128
          %s3035 = scalar_lea.hbm %s2, %s3034
          %s3037 = sshll.u32 %s3022, 4
          %s3038 = int_to_ptr.vmem [resolvable:$true] %s3037
          %3040 = dma.vmem_to_hbm [thread:$0]  %s3038, 128, %s3035, %s3019
        $region36: #{tpu_custom_call.1} parent=27 // pred_fallthru
          _
        // Predicated region
        $region37: #{tpu_custom_call.1} parent=27 // pred_check
          %p3041 = pneg %p124
        $region38: #{tpu_custom_call.1} parent=27 // pred_check_branch
          %3043 = sbr.rel (%p3041) target = $region40
        $region39: #{tpu_custom_call.1} parent=27 // pred_region
          %s3045 = ssub.s32 128, 128
          %3046 = vsyncadd %s3024, %s3045
          %s3047 = smul.addr %s25, 128
          %s3048 = scalar_lea.hbm %s3, %s3047
          %s3050 = sshll.u32 %s3027, 4
          %s3051 = int_to_ptr.vmem [resolvable:$true] %s3050
          %3053 = dma.vmem_to_hbm [thread:$0]  %s3051, 128, %s3048, %s3024
        $region40: #{tpu_custom_call.1} parent=27 // pred_fallthru
          _
      $region28: #{tpu_custom_call.1} parent=5 // pred_fallthru
        _
      %p3054 = scmp.le.s32.totalorder 2, %s16
      // Predicated region
      $region41: #{tpu_custom_call.1} parent=5 // pred_check
        %p3055 = pneg %p3054
      $region42: #{tpu_custom_call.1} parent=5 // pred_check_branch
        %3057 = sbr.rel (%p3055) target = $region44
      $region43: #{tpu_custom_call.1} parent=5 // pred_region
        %s3058 = ssub.s32 %s16, 2
        // Predicated region
        $region45: #{tpu_custom_call.1} parent=43 // pred_check
          %p3059 = pneg %p104
        $region46: #{tpu_custom_call.1} parent=43 // pred_check_branch
          %3061 = sbr.rel (%p3059) target = $region48
        $region47: #{tpu_custom_call.1} parent=43 // pred_region
          %s3062 = sand.u32 %s89, 1
          %s3063 = scalar_lea.sflag [#allocation3], %s3062
          %s3064 = sand.u32 %s89, 1
          %s3065 = smul.addr %s3064, 8
          %s3066 = scalar_lea.vmem [#allocation2], %s3065
          %3067 = dma.done %s3063, 128
        $region48: #{tpu_custom_call.1} parent=43 // pred_fallthru
          _
        // Predicated region
        $region49: #{tpu_custom_call.1} parent=43 // pred_check
          %p3068 = pneg %p130
        $region50: #{tpu_custom_call.1} parent=43 // pred_check_branch
          %3070 = sbr.rel (%p3068) target = $region52
        $region51: #{tpu_custom_call.1} parent=43 // pred_region
          %s3071 = sand.u32 %s115, 1
          %s3072 = scalar_lea.sflag [#allocation5], %s3071
          %s3073 = sand.u32 %s115, 1
          %s3074 = smul.addr %s3073, 8
          %s3075 = scalar_lea.vmem [#allocation4], %s3074
          %3076 = dma.done %s3072, 128
        $region52: #{tpu_custom_call.1} parent=43 // pred_fallthru
          _
      $region44: #{tpu_custom_call.1} parent=5 // pred_fallthru
        _
    $region6: #{tpu_custom_call.1} parent=1 // loop_footer
      %s20 = sadd.s32 1, %s16
    $region7: #{tpu_custom_call.1} parent=1 // loop_footer_branch
      %15 = sbr.rel target = $region3
    $region8: #{tpu_custom_call.1} parent=1 // loop_exit
      _
    %3077 = vsyncpa [#allocation3], 1
    %s3078 = scalar_lea.sflag [#allocation3], 1
    %3079 = vsyncpa %s3078, 1
    %3080 = vsyncpa [#allocation5], 1
    %s3081 = scalar_lea.sflag [#allocation5], 1
    %3082 = vsyncpa %s3081, 1

</llo_original>
